<compile_context>
chip_gen: v6e
topology: v6e:2x2x1
jax: 0.10.0
libtpu: 0.0.40
codegen_flags: <defaults>
</compile_context>

<pallas_src>
import jax
import jax.numpy as jnp
from jax.experimental import pallas as pl
from jax.experimental.pallas import tpu as pltpu


def _subpixel_weights(w_oihw):
    """Fold 2x-nearest-upsample + 3x3 conv into one (9*Cin, 4*Cout) matrix.

    Row ordering is (tap_a, tap_b, cin) over the 3x3 window of the 1-zero-padded
    ORIGINAL-resolution input; column ordering is (phase_i, phase_j, cout).
    Output pixel (2*ip+pi, 2*jp+pj) of the module equals
        sum_{a,b,ci} x_pad[ip+a, jp+b, ci] * W[(a,b,ci), (pi,pj,:)].
    """
    Cout, Cin, _, _ = w_oihw.shape
    w_hwio = jnp.transpose(w_oihw, (2, 3, 1, 0))            # (3, 3, Cin, Cout)
    wbig = jnp.zeros((3, 3, Cin, 2, 2, Cout), w_hwio.dtype)
    for pi in range(2):
        for pj in range(2):
            for dy in range(3):
                for dx in range(3):
                    # conv tap dy at output row 2*ip+pi reads upsampled row
                    # 2*ip+pi+dy-1  ->  original row  ip + floor((pi+dy-1)/2)
                    a = (pi + dy - 1) // 2 + 1              # tap row in padded window
                    b = (pj + dx - 1) // 2 + 1              # tap col in padded window
                    wbig = wbig.at[a, b, :, pi, pj, :].add(w_hwio[dy, dx])
    return wbig.reshape(9 * Cin, 4 * Cout)


def _pick_tile_h(H, W, Cin, Cout, itemsize, budget_bytes=8 * 1024 * 1024):
    """Largest tile_h dividing H (multiple of 8, or == H) whose buffers fit the budget."""
    def tile_bytes(th):
        patch = th * W * 9 * Cin * itemsize                 # im2col scratch
        taps = th * W * 9 * Cin * itemsize                  # transient tap slices
        acc = th * W * 4 * Cout * 4                         # f32 matmul result
        yblk = 2 * th * W * 4 * Cout * 4                    # double-buffered out block
        return patch + taps + acc + yblk

    cands = [d for d in range(H, 0, -1) if H % d == 0 and (d == H or d % 8 == 0)]
    for d in cands:
        if tile_bytes(d) <= budget_bytes:
            return d
    return cands[-1]


def _make_kernel(tile_h, W, Cin, Cout):
    K9 = 9 * Cin

    def kernel(x_ref, w_ref, y_ref, stats_ref, patch_ref):
        # x_ref     : (1, H+2, W+2, Cin)     zero-padded ORIGINAL-resolution image of
        #                                    batch n (block index constant across hb
        #                                    -> fetched once per n, overlapped).
        # w_ref     : (9*Cin, 4*Cout)        fused sub-pixel weights.
        # y_ref     : (1, tile_h, W, 4*Cout) pre-BN conv output block.
        # stats_ref : (1, 1, 2, 4*Cout)      per-tile [sum, sum_sq] BN partials.
        # patch_ref : (tile_h*W, 9*Cin)      VMEM im2col scratch.
        hb = pl.program_id(1)
        r0 = hb * tile_h
        # Halo block of original rows for this tile: (tile_h+2, W+2, Cin).
        halo = x_ref[0, pl.ds(r0, tile_h + 2), :, :]
        # im2col: 3x3 window taps -> single (tile_h*W, 9*Cin) operand, ONE MXU matmul
        # with K = 9*Cin instead of 9 tiny K = Cin matmuls.
        for a in range(3):
            for b in range(3):
                tap = halo[a:a + tile_h, b:b + W, :]        # (tile_h, W, Cin)
                k = (a * 3 + b) * Cin
                patch_ref[:, k:k + Cin] = tap.reshape(tile_h * W, Cin)
        acc = jnp.dot(patch_ref[...], w_ref[...],
                      preferred_element_type=jnp.float32)   # (tile_h*W, 4*Cout), f32
        # Per-tile BatchNorm partial statistics (globally finalized in the wrapper).
        stats_ref[0, 0, 0:1, :] = jnp.sum(acc, axis=0, keepdims=True)
        stats_ref[0, 0, 1:2, :] = jnp.sum(acc * acc, axis=0, keepdims=True)
        # NOTE: the conv bias is NOT added — a pre-BN per-channel constant is exactly
        # cancelled by the training-mode batch mean.
        y_ref[0, :, :, :] = acc.reshape(tile_h, W, 4 * Cout).astype(y_ref.dtype)

    return kernel


def up_conv_forward(x_nchw, w_oihw, bias, gamma, beta, *, tile_h=None,
                    compute_dtype=jnp.float32, eps=1e-5):
    """Forward of `up_conv`. x: (N, Cin, H, W) -> (N, Cout, 2H, 2W) (NCHW like torch)."""
    del bias  # exactly cancelled by training-mode BatchNorm (see kernel comment).
    N, Cin, H, W = x_nchw.shape
    Cout = w_oihw.shape[0]

    # NCHW -> NHWC at ORIGINAL resolution + 1-pixel zero pad.  The upsample and the
    # conv 'same' padding are fused into the kernel via the sub-pixel weight transform.
    # For v6e/v7x pass compute_dtype=jnp.bfloat16 to halve activation traffic.
    x_nhwc = jnp.transpose(x_nchw, (0, 2, 3, 1)).astype(compute_dtype)
    x_pad = jnp.pad(x_nhwc, ((0, 0), (1, 1), (1, 1), (0, 0)))
    wmat = _subpixel_weights(w_oihw).astype(compute_dtype)

    itemsize = jnp.dtype(compute_dtype).itemsize
    if tile_h is None:
        tile_h = _pick_tile_h(H, W, Cin, Cout, itemsize)
    assert H % tile_h == 0 and (tile_h == H or tile_h % 8 == 0), (H, tile_h)
    n_hb = H // tile_h

    # TODO(synk): for very large H*W with small Cin the whole padded image block may not
    # fit VMEM; add overlapping H-halo input tiling instead of a full-image block.
    kernel = _make_kernel(tile_h, W, Cin, Cout)
    y_slab, stats = pl.pallas_call(
        kernel,
        grid=(N, n_hb),
        in_specs=[
            pl.BlockSpec((1, H + 2, W + 2, Cin), lambda n, hb: (n, 0, 0, 0)),
            pl.BlockSpec((9 * Cin, 4 * Cout), lambda n, hb: (0, 0)),
        ],
        out_specs=(
            pl.BlockSpec((1, tile_h, W, 4 * Cout), lambda n, hb: (n, hb, 0, 0)),
            pl.BlockSpec((1, 1, 2, 4 * Cout), lambda n, hb: (n, hb, 0, 0)),
        ),
        out_shape=(
            jax.ShapeDtypeStruct((N, H, W, 4 * Cout), jnp.float32),
            jax.ShapeDtypeStruct((N, n_hb, 2, 4 * Cout), jnp.float32),
        ),
        scratch_shapes=[pltpu.VMEM((tile_h * W, 9 * Cin), compute_dtype)],
        compiler_params=pltpu.CompilerParams(
            dimension_semantics=("parallel", "parallel"),
            vmem_limit_bytes=48 * 1024 * 1024,
        ),
    )(x_pad, wmat)

    # ---- BatchNorm finalize (exact global batch stats) + ReLU + NCHW re-layout ----
    # Single fused XLA elementwise+transpose pass over the output; kept in the wrapper
    # (as sanctioned by the review) to avoid an extra Pallas HBM round-trip.
    count = N * (2 * H) * (2 * W)
    sum_c = stats[:, :, 0, :].sum(axis=(0, 1)).reshape(4, Cout).sum(axis=0)   # (Cout,)
    sq_c = stats[:, :, 1, :].sum(axis=(0, 1)).reshape(4, Cout).sum(axis=0)    # (Cout,)
    mean = sum_c / count
    var = jnp.maximum(sq_c / count - mean * mean, 0.0)
    scale = gamma * jax.lax.rsqrt(var + eps)
    shift = beta - mean * scale

    y = y_slab.reshape(N, H, W, 2, 2, Cout)                 # (n, ip, jp, pi, pj, c)
    y = jnp.maximum(y * scale + shift, 0.0)
    out = jnp.transpose(y, (0, 5, 1, 3, 2, 4))              # (n, c, ip, pi, jp, pj)
    return out.reshape(N, Cout, 2 * H, 2 * W)


def up_conv_reference(x, w, b, gamma, beta, eps=1e-5):
    """Pure-JAX reference matching the torch module (training-mode BN, with bias)."""
    x_up = jnp.repeat(jnp.repeat(x, 2, axis=2), 2, axis=3)
    y = jax.lax.conv_general_dilated(
        x_up, w, window_strides=(1, 1), padding=((1, 1), (1, 1)),
        dimension_numbers=("NCHW", "OIHW", "NCHW"))
    y = y + b.reshape(1, -1, 1, 1)
    mean = jnp.mean(y, axis=(0, 2, 3), keepdims=True)
    var = jnp.mean((y - mean) ** 2, axis=(0, 2, 3), keepdims=True)
    yn = (y - mean) * jax.lax.rsqrt(var + eps)
    yn = yn * gamma.reshape(1, -1, 1, 1) + beta.reshape(1, -1, 1, 1)
    return jnp.maximum(yn, 0.0)


if __name__ == "__main__":
    key = jax.random.PRNGKey(0)
    k_x, k_w, k_b, k_g, k_be = jax.random.split(key, 5)

    N, ch_in, H, W = 2, 4, 16, 16
    ch_out = 8

    x = jax.random.normal(k_x, (N, ch_in, H, W), dtype=jnp.float32)
    w = jax.random.normal(k_w, (ch_out, ch_in, 3, 3), dtype=jnp.float32) * 0.1
    b = jax.random.normal(k_b, (ch_out,), dtype=jnp.float32) * 0.1
    gamma = 1.0 + 0.1 * jax.random.normal(k_g, (ch_out,), dtype=jnp.float32)
    beta = 0.1 * jax.random.normal(k_be, (ch_out,), dtype=jnp.float32)

    ref = up_conv_reference(x, w, b, gamma, beta)

    # Default tiling (tile_h == H at this small size).
    out = jax.block_until_ready(up_conv_forward(x, w, b, gamma, beta))
    assert out.shape == (N, ch_out, 2 * H, 2 * W), out.shape
    assert jnp.allclose(out, ref, atol=1e-4, rtol=1e-4), float(
        jnp.max(jnp.abs(out - ref)))

    # Exercise a multi-step H grid (tile_h < H) to validate the tiled/partial-stats path.
    out2 = jax.block_until_ready(up_conv_forward(x, w, b, gamma, beta, tile_h=8))
    assert jnp.allclose(out2, ref, atol=1e-4, rtol=1e-4), float(
        jnp.max(jnp.abs(out2 - ref)))

    print("KERNEL_OK")
</pallas_src>

<mosaic_0001>
module attributes {stable_mosaic.version = 11 : i64} {
  func.func @kernel(%arg0: i32, %arg1: i32, %arg2: memref<1x18x18x4xf32, #tpu.memory_space<vmem>>, %arg3: memref<36x32xf32, #tpu.memory_space<vmem>>, %arg4: memref<1x16x16x32xf32, #tpu.memory_space<vmem>>, %arg5: memref<1x1x2x32xf32, #tpu.memory_space<vmem>>, %arg6: memref<256x36xf32, #tpu.memory_space<vmem>>) attributes {dimension_semantics = [#tpu.dimension_semantics<parallel>, #tpu.dimension_semantics<parallel>], iteration_bounds = array<i64: 2, 1>, scalar_prefetch = 0 : i64, scratch_operands = 1 : i64, tpu.core_type = #tpu.core_type<tc>, window_params = [{transform_indices = @transform_0, window_bounds = array<i64: 1, 18, 18, 4>}, {pipeline_mode = #tpu.pipeline_mode<synchronous>, transform_indices = @transform_1, window_bounds = array<i64: 36, 32>}, {transform_indices = @transform_2, window_bounds = array<i64: 1, 16, 16, 32>}, {transform_indices = @transform_3, window_bounds = array<i64: 1, 1, 2, 32>}]} {
    %c16_i32 = arith.constant 16 : i32
    %0 = arith.muli %arg1, %c16_i32 : i32
    %c0 = arith.constant 0 : index
    %1 = arith.index_cast %0 : i32 to index
    %c0_0 = arith.constant 0 : index
    %c0_1 = arith.constant 0 : index
    %2 = vector.load %arg2[%c0, %1, %c0_0, %c0_1] : memref<1x18x18x4xf32, #tpu.memory_space<vmem>>, vector<1x18x18x4xf32>
    %3 = vector.shape_cast %2 : vector<1x18x18x4xf32> to vector<18x18x4xf32>
    %4 = vector.extract_strided_slice %3 {offsets = [0, 0, 0], sizes = [16, 16, 4], strides = [1, 1, 1]} : vector<18x18x4xf32> to vector<16x16x4xf32>
    %5 = vector.shape_cast %4 : vector<16x16x4xf32> to vector<256x4xf32>
    %c0_2 = arith.constant 0 : index
    %c0_3 = arith.constant 0 : index
    %6 = vector.load %arg6[%c0_2, %c0_3] : memref<256x36xf32, #tpu.memory_space<vmem>>, vector<256x4xf32>
    tpu.vector_store %arg6[%c0_2, %c0_3], %5 {strides = array<i32>} : memref<256x36xf32, #tpu.memory_space<vmem>>, vector<256x4xf32>,
    %7 = vector.extract_strided_slice %3 {offsets = [0, 1, 0], sizes = [16, 16, 4], strides = [1, 1, 1]} : vector<18x18x4xf32> to vector<16x16x4xf32>
    %8 = vector.shape_cast %7 : vector<16x16x4xf32> to vector<256x4xf32>
    %c0_4 = arith.constant 0 : index
    %c4 = arith.constant 4 : index
    %9 = vector.load %arg6[%c0_4, %c4] : memref<256x36xf32, #tpu.memory_space<vmem>>, vector<256x4xf32>
    tpu.vector_store %arg6[%c0_4, %c4], %8 {strides = array<i32>} : memref<256x36xf32, #tpu.memory_space<vmem>>, vector<256x4xf32>,
    %10 = vector.extract_strided_slice %3 {offsets = [0, 2, 0], sizes = [16, 16, 4], strides = [1, 1, 1]} : vector<18x18x4xf32> to vector<16x16x4xf32>
    %11 = vector.shape_cast %10 : vector<16x16x4xf32> to vector<256x4xf32>
    %c0_5 = arith.constant 0 : index
    %c8 = arith.constant 8 : index
    %12 = vector.load %arg6[%c0_5, %c8] : memref<256x36xf32, #tpu.memory_space<vmem>>, vector<256x4xf32>
    tpu.vector_store %arg6[%c0_5, %c8], %11 {strides = array<i32>} : memref<256x36xf32, #tpu.memory_space<vmem>>, vector<256x4xf32>,
    %13 = vector.extract_strided_slice %3 {offsets = [1, 0, 0], sizes = [16, 16, 4], strides = [1, 1, 1]} : vector<18x18x4xf32> to vector<16x16x4xf32>
    %14 = vector.shape_cast %13 : vector<16x16x4xf32> to vector<256x4xf32>
    %c0_6 = arith.constant 0 : index
    %c12 = arith.constant 12 : index
    %15 = vector.load %arg6[%c0_6, %c12] : memref<256x36xf32, #tpu.memory_space<vmem>>, vector<256x4xf32>
    tpu.vector_store %arg6[%c0_6, %c12], %14 {strides = array<i32>} : memref<256x36xf32, #tpu.memory_space<vmem>>, vector<256x4xf32>,
    %16 = vector.extract_strided_slice %3 {offsets = [1, 1, 0], sizes = [16, 16, 4], strides = [1, 1, 1]} : vector<18x18x4xf32> to vector<16x16x4xf32>
    %17 = vector.shape_cast %16 : vector<16x16x4xf32> to vector<256x4xf32>
    %c0_7 = arith.constant 0 : index
    %c16 = arith.constant 16 : index
    %18 = vector.load %arg6[%c0_7, %c16] : memref<256x36xf32, #tpu.memory_space<vmem>>, vector<256x4xf32>
    tpu.vector_store %arg6[%c0_7, %c16], %17 {strides = array<i32>} : memref<256x36xf32, #tpu.memory_space<vmem>>, vector<256x4xf32>,
    %19 = vector.extract_strided_slice %3 {offsets = [1, 2, 0], sizes = [16, 16, 4], strides = [1, 1, 1]} : vector<18x18x4xf32> to vector<16x16x4xf32>
    %20 = vector.shape_cast %19 : vector<16x16x4xf32> to vector<256x4xf32>
    %c0_8 = arith.constant 0 : index
    %c20 = arith.constant 20 : index
    %21 = vector.load %arg6[%c0_8, %c20] : memref<256x36xf32, #tpu.memory_space<vmem>>, vector<256x4xf32>
    tpu.vector_store %arg6[%c0_8, %c20], %20 {strides = array<i32>} : memref<256x36xf32, #tpu.memory_space<vmem>>, vector<256x4xf32>,
    %22 = vector.extract_strided_slice %3 {offsets = [2, 0, 0], sizes = [16, 16, 4], strides = [1, 1, 1]} : vector<18x18x4xf32> to vector<16x16x4xf32>
    %23 = vector.shape_cast %22 : vector<16x16x4xf32> to vector<256x4xf32>
    %c0_9 = arith.constant 0 : index
    %c24 = arith.constant 24 : index
    %24 = vector.load %arg6[%c0_9, %c24] : memref<256x36xf32, #tpu.memory_space<vmem>>, vector<256x4xf32>
    tpu.vector_store %arg6[%c0_9, %c24], %23 {strides = array<i32>} : memref<256x36xf32, #tpu.memory_space<vmem>>, vector<256x4xf32>,
    %25 = vector.extract_strided_slice %3 {offsets = [2, 1, 0], sizes = [16, 16, 4], strides = [1, 1, 1]} : vector<18x18x4xf32> to vector<16x16x4xf32>
    %26 = vector.shape_cast %25 : vector<16x16x4xf32> to vector<256x4xf32>
    %c0_10 = arith.constant 0 : index
    %c28 = arith.constant 28 : index
    %27 = vector.load %arg6[%c0_10, %c28] : memref<256x36xf32, #tpu.memory_space<vmem>>, vector<256x4xf32>
    tpu.vector_store %arg6[%c0_10, %c28], %26 {strides = array<i32>} : memref<256x36xf32, #tpu.memory_space<vmem>>, vector<256x4xf32>,
    %28 = vector.extract_strided_slice %3 {offsets = [2, 2, 0], sizes = [16, 16, 4], strides = [1, 1, 1]} : vector<18x18x4xf32> to vector<16x16x4xf32>
    %29 = vector.shape_cast %28 : vector<16x16x4xf32> to vector<256x4xf32>
    %c0_11 = arith.constant 0 : index
    %c32 = arith.constant 32 : index
    %30 = vector.load %arg6[%c0_11, %c32] : memref<256x36xf32, #tpu.memory_space<vmem>>, vector<256x4xf32>
    tpu.vector_store %arg6[%c0_11, %c32], %29 {strides = array<i32>} : memref<256x36xf32, #tpu.memory_space<vmem>>, vector<256x4xf32>,
    %c0_12 = arith.constant 0 : index
    %c0_13 = arith.constant 0 : index
    %31 = vector.load %arg6[%c0_12, %c0_13] : memref<256x36xf32, #tpu.memory_space<vmem>>, vector<256x36xf32>
    %c0_14 = arith.constant 0 : index
    %c0_15 = arith.constant 0 : index
    %32 = vector.load %arg3[%c0_14, %c0_15] : memref<36x32xf32, #tpu.memory_space<vmem>>, vector<36x32xf32>
    %cst = arith.constant dense<0.000000e+00> : vector<256x32xf32>
    %33 = tpu.matmul %31, %32, %cst {dimension_numbers = #tpu.dot_dimension_numbers<[1], [0], [0], [1], [0, 0, 1, 1], [], []>} : vector<256x36xf32>, vector<36x32xf32>, vector<256x32xf32> -> vector<256x32xf32>
    %cst_16 = arith.constant dense<0.000000e+00> : vector<32xf32>
    %34 = vector.multi_reduction <add>, %33, %cst_16 [0] : vector<256x32xf32> to vector<32xf32>
    %35 = vector.shape_cast %34 : vector<32xf32> to vector<1x32xf32>
    %c0_17 = arith.constant 0 : index
    %c0_18 = arith.constant 0 : index
    %c0_19 = arith.constant 0 : index
    %c0_20 = arith.constant 0 : index
    %36 = vector.load %arg5[%c0_17, %c0_18, %c0_19, %c0_20] : memref<1x1x2x32xf32, #tpu.memory_space<vmem>>, vector<1x1x1x32xf32>
    %37 = vector.shape_cast %36 : vector<1x1x1x32xf32> to vector<1x32xf32>
    %38 = vector.shape_cast %35 : vector<1x32xf32> to vector<1x1x1x32xf32>
    tpu.vector_store %arg5[%c0_17, %c0_18, %c0_19, %c0_20], %38 {strides = array<i32>} : memref<1x1x2x32xf32, #tpu.memory_space<vmem>>, vector<1x1x1x32xf32>,
    %39 = arith.mulf %33, %33 : vector<256x32xf32>
    %cst_21 = arith.constant dense<0.000000e+00> : vector<32xf32>
    %40 = vector.multi_reduction <add>, %39, %cst_21 [0] : vector<256x32xf32> to vector<32xf32>
    %41 = vector.shape_cast %40 : vector<32xf32> to vector<1x32xf32>
    %c0_22 = arith.constant 0 : index
    %c0_23 = arith.constant 0 : index
    %c1 = arith.constant 1 : index
    %c0_24 = arith.constant 0 : index
    %42 = vector.load %arg5[%c0_22, %c0_23, %c1, %c0_24] : memref<1x1x2x32xf32, #tpu.memory_space<vmem>>, vector<1x1x1x32xf32>
    %43 = vector.shape_cast %42 : vector<1x1x1x32xf32> to vector<1x32xf32>
    %44 = vector.shape_cast %41 : vector<1x32xf32> to vector<1x1x1x32xf32>
    tpu.vector_store %arg5[%c0_22, %c0_23, %c1, %c0_24], %44 {strides = array<i32>} : memref<1x1x2x32xf32, #tpu.memory_space<vmem>>, vector<1x1x1x32xf32>,
    %45 = vector.shape_cast %33 : vector<256x32xf32> to vector<16x16x32xf32>
    %c0_25 = arith.constant 0 : index
    %c0_26 = arith.constant 0 : index
    %c0_27 = arith.constant 0 : index
    %c0_28 = arith.constant 0 : index
    %46 = vector.load %arg4[%c0_25, %c0_26, %c0_27, %c0_28] : memref<1x16x16x32xf32, #tpu.memory_space<vmem>>, vector<1x16x16x32xf32>
    %47 = vector.shape_cast %46 : vector<1x16x16x32xf32> to vector<16x16x32xf32>
    %48 = vector.shape_cast %45 : vector<16x16x32xf32> to vector<1x16x16x32xf32>
    tpu.vector_store %arg4[%c0_25, %c0_26, %c0_27, %c0_28], %48 {strides = array<i32>} : memref<1x16x16x32xf32, #tpu.memory_space<vmem>>, vector<1x16x16x32xf32>,
    return
  }
  func.func @transform_0(%arg0: i32, %arg1: i32) -> (i32, i32, i32, i32) {
    %c0_i32 = arith.constant 0 : i32
    %c0_i32_0 = arith.constant 0 : i32
    %c0_i32_1 = arith.constant 0 : i32
    %c0_i32_2 = arith.constant 0 : i32
    return %arg0, %c0_i32, %c0_i32_0, %c0_i32_1 : i32, i32, i32, i32
  }
  func.func @transform_1(%arg0: i32, %arg1: i32) -> (i32, i32) {
    %c0_i32 = arith.constant 0 : i32
    %c0_i32_0 = arith.constant 0 : i32
    %c0_i32_1 = arith.constant 0 : i32
    return %c0_i32, %c0_i32_0 : i32, i32
  }
  func.func @transform_2(%arg0: i32, %arg1: i32) -> (i32, i32, i32, i32) {
    %c0_i32 = arith.constant 0 : i32
    %c0_i32_0 = arith.constant 0 : i32
    %c0_i32_1 = arith.constant 0 : i32
    return %arg0, %arg1, %c0_i32, %c0_i32_0 : i32, i32, i32, i32
  }
  func.func @transform_3(%arg0: i32, %arg1: i32) -> (i32, i32, i32, i32) {
    %c0_i32 = arith.constant 0 : i32
    %c0_i32_0 = arith.constant 0 : i32
    %c0_i32_1 = arith.constant 0 : i32
    return %arg0, %arg1, %c0_i32, %c0_i32_0 : i32, i32, i32, i32
  }
}

</mosaic_0001>

<llo_original>
// kernel: tpu_custom_call.1
$region0: #{tpu_custom_call.1}
  #allocation0 [shape = 'u32[]', space=smem, size = 0x4, offset = 0x4, fixed_abs, tag = 'smem constant byte address 0x4 - core index']
  #allocation1 [shape = 'u32[144,128]{1,0:T(1,128)}', space=vmem, size = 0x12000, scoped, tag = 'internal scratch']
  #allocation2 [shape = 'f32[256,36]{1,0:T(8,128)}', space=vmem, size = 0x20000, scoped, tag = 'scratch operand']
  %s0 = inlined_call_operand.vmem [shape: f32[2,18,18,4], index: 0, kind: input, shape index: {}]
  %s1 = inlined_call_operand.vmem [shape: f32[36,32], index: 1, kind: input, shape index: {}]
  %s2 = inlined_call_operand.hbm [shape: f32[2,16,16,32], index: 2, kind: output, shape index: {0}]
  %s3 = inlined_call_operand.hbm [shape: f32[2,1,2,32], index: 3, kind: output, shape index: {1}]
  %4 = xla_tuple %s2, %s3
  %s5 = sld [smem:[#allocation0]]
  $region49: #{tpu_custom_call.1} parent=0
    _
  %s7 = ssub.s32 1, %s5
  %s8 = scalar_select 0, %s7, %s5
  $region1: #{tpu_custom_call.1} parent=0
    #allocation3 [shape = 'u8[262144]{0}', space=vmem, size = 0x40000, scoped, tag = 'output window, operand 0']
    #allocation4 [shape = 's32[2]{0}', space=sflag, size = 0x8, scoped, tag = 'scoped memory for tpu_custom_call.1']
    #allocation5 [shape = 'u8[2048]{0}', space=vmem, size = 0x800, scoped, tag = 'output window, operand 1']
    #allocation6 [shape = 's32[2]{0}', space=sflag, size = 0x8, scoped, tag = 'scoped memory for tpu_custom_call.1']
    %9 = vsyncpa [#allocation4], 0
    %s10 = scalar_lea.sflag [#allocation4], 1
    %11 = vsyncpa %s10, 0
    %12 = vsyncpa [#allocation6], 0
    %s13 = scalar_lea.sflag [#allocation6], 1
    %14 = vsyncpa %s13, 0
    loop: start=0, step=1, limit=4
    $region2: #{tpu_custom_call.1} parent=1 // loop_pre_header
      _
    $region3: #{tpu_custom_call.1} parent=1 // loop_header
      %s16 = sphi 0, %s20
      %p17 = scmp.ge.s32.totalorder %s16, 4
      %s23 = sphi 0, %s35
      %s24 = sphi 0, %s31
      %s25 = sphi 0, %s23
      %s26 = sphi 0, %s24
      %s27 = sphi 0, %s25
      %s28 = sphi 0, %s26
      %s38 = sphi 0, %s40
      %s41 = sphi 0, %s38
      %s42 = sphi 0, %s41
      %s58 = sphi 0, %s42
      %s62 = sphi 0, %s62
      %s64 = sphi 0, %s62
      %s65 = sphi 0, %s64
      %s79 = sphi 0, %s65
      %s87 = sphi 0, %s89
      %s90 = sphi 0, %s87
      %s91 = sphi 0, %s90
      %s107 = sphi 0, %s91
      %s115 = sphi 0, %s117
      %s118 = sphi 0, %s115
      %s119 = sphi 0, %s118
      %s135 = sphi 0, %s119
    $region4: #{tpu_custom_call.1} parent=1 // loop_header_branch
      %19 = sbr.rel (%p17) target = $region8
    $region5: #{tpu_custom_call.1} parent=1 // loop_body
      %s21 = ssub.s32 %s16, 1
      %s22 = ssub.s32 %s16, 2
      %s29 = sadd.s32 1, %s24
      %p30 = scmp.ge.s32.totalorder %s29, 1
      %s31 = scalar_select %p30, 0, %s29
      %s32 = sadd.s32 1, %s23
      %s33 = scalar_select %p30, %s32, %s23
      %p34 = scmp.ge.s32.totalorder %s33, 2
      %s35 = scalar_select %p34, 0, %s33
      %s36 = ssub.s32 %s23, %s35
      %p37 = scmp.eq.s32.totalorder %s36, 0
      %s39 = sadd.s32 %s38, 1
      %s40 = scalar_select %p37, %s38, %s39
      %p43 = pneg %p37
      %p44 = scmp.eq.s32.totalorder %s16, 1
      %p45 = por %p43, %p44
      %p46 = scmp.ne.s32.totalorder %s38, %s41
      %p47 = scmp.eq.s32.totalorder %s16, 0
      %p48 = por %p46, %p47
      %p49 = scmp.ne.s32.totalorder %s38, %s41
      %p50 = scmp.eq.s32.totalorder %s21, 1
      %p51 = por %p49, %p50
      %p52 = scmp.ne.s32.totalorder %s41, %s42
      %p53 = scmp.eq.s32.totalorder %s21, 0
      %p54 = por %p52, %p53
      %p55 = scmp.ne.s32.totalorder %s41, %s42
      %p56 = scmp.eq.s32.totalorder %s22, 1
      %p57 = por %p55, %p56
      %p59 = scmp.ne.s32.totalorder %s42, %s58
      %p60 = scmp.eq.s32.totalorder %s22, 0
      %p61 = por %p59, %p60
      %s63 = sadd.s32 %s62, 1
      %p66 = scmp.eq.s32.totalorder %s16, 1
      %p67 = scmp.ne.s32.totalorder %s62, %s64
      %p68 = scmp.eq.s32.totalorder %s16, 0
      %p69 = por %p67, %p68
      %p70 = scmp.ne.s32.totalorder %s62, %s64
      %p71 = scmp.eq.s32.totalorder %s21, 1
      %p72 = por %p70, %p71
      %p73 = scmp.ne.s32.totalorder %s64, %s65
      %p74 = scmp.eq.s32.totalorder %s21, 0
      %p75 = por %p73, %p74
      %p76 = scmp.ne.s32.totalorder %s64, %s65
      %p77 = scmp.eq.s32.totalorder %s22, 1
      %p78 = por %p76, %p77
      %p80 = scmp.ne.s32.totalorder %s65, %s79
      %p81 = scmp.eq.s32.totalorder %s22, 0
      %p82 = por %p80, %p81
      %s83 = ssub.s32 %s23, %s35
      %s84 = ssub.s32 %s24, %s31
      %s85 = sor.u32 %s83, %s84
      %p86 = scmp.eq.s32.totalorder %s85, 0
      %s88 = sadd.s32 %s87, 1
      %s89 = scalar_select %p86, %s87, %s88
      %p92 = pneg %p86
      %p93 = scmp.eq.s32.totalorder %s16, 1
      %p94 = por %p92, %p93
      %p95 = scmp.ne.s32.totalorder %s87, %s90
      %p96 = scmp.eq.s32.totalorder %s16, 0
      %p97 = por %p95, %p96
      %p98 = scmp.ne.s32.totalorder %s87, %s90
      %p99 = scmp.eq.s32.totalorder %s21, 1
      %p100 = por %p98, %p99
      %p101 = scmp.ne.s32.totalorder %s90, %s91
      %p102 = scmp.eq.s32.totalorder %s21, 0
      %p103 = por %p101, %p102
      %p104 = scmp.ne.s32.totalorder %s90, %s91
      %p105 = scmp.eq.s32.totalorder %s22, 1
      %p106 = por %p104, %p105
      %p108 = scmp.ne.s32.totalorder %s91, %s107
      %p109 = scmp.eq.s32.totalorder %s22, 0
      %p110 = por %p108, %p109
      %s111 = ssub.s32 %s23, %s35
      %s112 = ssub.s32 %s24, %s31
      %s113 = sor.u32 %s111, %s112
      %p114 = scmp.eq.s32.totalorder %s113, 0
      %s116 = sadd.s32 %s115, 1
      %s117 = scalar_select %p114, %s115, %s116
      %p120 = pneg %p114
      %p121 = scmp.eq.s32.totalorder %s16, 1
      %p122 = por %p120, %p121
      %p123 = scmp.ne.s32.totalorder %s115, %s118
      %p124 = scmp.eq.s32.totalorder %s16, 0
      %p125 = por %p123, %p124
      %p126 = scmp.ne.s32.totalorder %s115, %s118
      %p127 = scmp.eq.s32.totalorder %s21, 1
      %p128 = por %p126, %p127
      %p129 = scmp.ne.s32.totalorder %s118, %s119
      %p130 = scmp.eq.s32.totalorder %s21, 0
      %p131 = por %p129, %p130
      %p132 = scmp.ne.s32.totalorder %s118, %s119
      %p133 = scmp.eq.s32.totalorder %s22, 1
      %p134 = por %p132, %p133
      %p136 = scmp.ne.s32.totalorder %s119, %s135
      %p137 = scmp.eq.s32.totalorder %s22, 0
      %p138 = por %p136, %p137
      %p139 = scmp.le.s32.totalorder 1, %s16
      %p140 = scmp.lt.s32.totalorder %s16, 3
      %p141 = pnand %p139, %p140
      %p142 = pneg %p141
      // Predicated region
      $region9: #{tpu_custom_call.1} parent=5 // pred_check
        _
      $region10: #{tpu_custom_call.1} parent=5 // pred_check_branch
        %144 = sbr.rel (%p141) target = $region12
      $region11: #{tpu_custom_call.1} parent=5 // pred_region
        %s145 = ssub.s32 %s16, 1
        // Predicated region
        $region13: #{tpu_custom_call.1} parent=11 // pred_check
          %p146 = pneg %p75
        $region14: #{tpu_custom_call.1} parent=11 // pred_check_branch
          %148 = sbr.rel (%p146) target = $region16
        $region15: #{tpu_custom_call.1} parent=11 // pred_region
          _
        $region16: #{tpu_custom_call.1} parent=11 // pred_fallthru
          _
      $region12: #{tpu_custom_call.1} parent=5 // pred_fallthru
        _
      %p149 = scmp.lt.s32.totalorder %s16, 2
      // Predicated region
      $region17: #{tpu_custom_call.1} parent=5 // pred_check
        %p150 = pneg %p149
      $region18: #{tpu_custom_call.1} parent=5 // pred_check_branch
        %152 = sbr.rel (%p150) target = $region20
      $region19: #{tpu_custom_call.1} parent=5 // pred_region
        // Predicated region
        $region21: #{tpu_custom_call.1} parent=19 // pred_check
          %p153 = pneg %p48
        $region22: #{tpu_custom_call.1} parent=19 // pred_check_branch
          %155 = sbr.rel (%p153) target = $region24
        $region23: #{tpu_custom_call.1} parent=19 // pred_region
          %p156 = scmp.lt.s32.totalorder %s23, 1
          %s157 = scalar_select %p156, %s23, 1
          %s158 = smul.addr %s157, 54
          %s159 = smul.addr %s158, 8
          %s160 = scalar_lea.vmem %s0, %s159
        $region24: #{tpu_custom_call.1} parent=19 // pred_fallthru
          _
      $region20: #{tpu_custom_call.1} parent=5 // pred_fallthru
        _
      %p161 = scmp.le.s32.totalorder 1, %s16
      %p162 = scmp.lt.s32.totalorder %s16, 3
      %p163 = pnand %p161, %p162
      %p164 = pneg %p163
      // Predicated region
      $region25: #{tpu_custom_call.1} parent=5 // pred_check
        _
      $region26: #{tpu_custom_call.1} parent=5 // pred_check_branch
        %166 = sbr.rel (%p163) target = $region28
      $region27: #{tpu_custom_call.1} parent=5 // pred_region
        %s167 = ssub.s32 %s16, 1
        %p168 = scmp.lt.s32.totalorder %s25, 1
        %s169 = scalar_select %p168, %s25, 1
        %s170 = smul.addr %s169, 54
        %s171 = smul.addr %s170, 8
        %s172 = scalar_lea.vmem %s0, %s171
        %p173 = pneg %p54
        %p174 = pneg %p51
        %p175 = pneg %p75
        %p176 = pneg %p72
        %p177 = pneg %p103
        %p178 = pneg %p100
        %s179 = sand.u32 %s90, 1
        %s180 = scalar_lea.sflag [#allocation4], %s179
        %s181 = sand.u32 %s90, 1
        %s182 = smul.addr %s181, 256
        %s183 = scalar_lea.vmem [#allocation3], %s182
        %p184 = pneg %p131
        %p185 = pneg %p128
        %s186 = sand.u32 %s118, 1
        %s187 = scalar_lea.sflag [#allocation6], %s186
        %s188 = sand.u32 %s118, 1
        %s189 = smul.addr %s188, 2
        %s190 = scalar_lea.vmem [#allocation5], %s189
        %p191 = scmp.lt.s32.totalorder %s25, 1
        %s192 = scalar_select %p191, %s25, 1
        %s193 = smul.addr %s192, 54
        %s194 = smul.addr %s193, 8
        %s195 = scalar_lea.vmem %s0, %s194
        %s196 = smul.u32 16, %s26
        %s197 = smul.u32 %s26, 16
        %s198 = smul.u32 %s197, 24
        %s199 = scalar_lea.vmem %s195, %s198
        %v200 = vld [vmem:[%s199] sm:$0xff]
        %v201 = vld [vmem:[%s199 + $0x8] sm:$0xff]
        %v202 = vld [vmem:[%s199 + $0x10] sm:$0x3]
        %v203 = vld [vmem:[%s199 + $0x18] sm:$0xff]
        %v204 = vld [vmem:[%s199 + $0x20] sm:$0xff]
        %v205 = vld [vmem:[%s199 + $0x28] sm:$0x3]
        %v206 = vld [vmem:[%s199 + $0x30] sm:$0xff]
        %v207 = vld [vmem:[%s199 + $0x38] sm:$0xff]
        %v208 = vld [vmem:[%s199 + $0x40] sm:$0x3]
        %v209 = vld [vmem:[%s199 + $0x48] sm:$0xff]
        %v210 = vld [vmem:[%s199 + $0x50] sm:$0xff]
        %v211 = vld [vmem:[%s199 + $0x58] sm:$0x3]
        %v212 = vld [vmem:[%s199 + $0x60] sm:$0xff]
        %v213 = vld [vmem:[%s199 + $0x68] sm:$0xff]
        %v214 = vld [vmem:[%s199 + $0x70] sm:$0x3]
        %v215 = vld [vmem:[%s199 + $0x78] sm:$0xff]
        %v216 = vld [vmem:[%s199 + $0x80] sm:$0xff]
        %v217 = vld [vmem:[%s199 + $0x88] sm:$0x3]
        %v218 = vld [vmem:[%s199 + $0x90] sm:$0xff]
        %v219 = vld [vmem:[%s199 + $0x98] sm:$0xff]
        %v220 = vld [vmem:[%s199 + $0xa0] sm:$0x3]
        %v221 = vld [vmem:[%s199 + $0xa8] sm:$0xff]
        %v222 = vld [vmem:[%s199 + $0xb0] sm:$0xff]
        %v223 = vld [vmem:[%s199 + $0xb8] sm:$0x3]
        %v224 = vld [vmem:[%s199 + $0xc0] sm:$0xff]
        %v225 = vld [vmem:[%s199 + $0xc8] sm:$0xff]
        %v226 = vld [vmem:[%s199 + $0xd0] sm:$0x3]
        %v227 = vld [vmem:[%s199 + $0xd8] sm:$0xff]
        %v228 = vld [vmem:[%s199 + $0xe0] sm:$0xff]
        %v229 = vld [vmem:[%s199 + $0xe8] sm:$0x3]
        %v230 = vld [vmem:[%s199 + $0xf0] sm:$0xff]
        %v231 = vld [vmem:[%s199 + $0xf8] sm:$0xff]
        %v232 = vld [vmem:[%s199 + $0x100] sm:$0x3]
        %v233 = vld [vmem:[%s199 + $0x108] sm:$0xff]
        %v234 = vld [vmem:[%s199 + $0x110] sm:$0xff]
        %v235 = vld [vmem:[%s199 + $0x118] sm:$0x3]
        %v236 = vld [vmem:[%s199 + $0x120] sm:$0xff]
        %v237 = vld [vmem:[%s199 + $0x128] sm:$0xff]
        %v238 = vld [vmem:[%s199 + $0x130] sm:$0x3]
        %v239 = vld [vmem:[%s199 + $0x138] sm:$0xff]
        %v240 = vld [vmem:[%s199 + $0x140] sm:$0xff]
        %v241 = vld [vmem:[%s199 + $0x148] sm:$0x3]
        %v242 = vld [vmem:[%s199 + $0x150] sm:$0xff]
        %v243 = vld [vmem:[%s199 + $0x158] sm:$0xff]
        %v244 = vld [vmem:[%s199 + $0x160] sm:$0x3]
        %v245 = vld [vmem:[%s199 + $0x168] sm:$0xff]
        %v246 = vld [vmem:[%s199 + $0x170] sm:$0xff]
        %v247 = vld [vmem:[%s199 + $0x178] sm:$0x3]
        %v248 = vld [vmem:[%s199 + $0x180] sm:$0xff]
        %v249 = vld [vmem:[%s199 + $0x188] sm:$0xff]
        %v250 = vld [vmem:[%s199 + $0x190] sm:$0x3]
        %v251 = vld [vmem:[%s199 + $0x198] sm:$0xff]
        %v252 = vld [vmem:[%s199 + $0x1a0] sm:$0xff]
        %v253 = vld [vmem:[%s199 + $0x1a8] sm:$0x3]
        %vm254 = vcmask 31744
        %255 = vst.msk [vmem:[#allocation2] sm:$0xff] %vm254, %v200
        %256 = vst.msk [vmem:[#allocation2 + $0x8] sm:$0xff] %vm254, %v201
        %257 = vst.msk [vmem:[#allocation2 + $0x10] sm:$0xff] %vm254, %v203
        %258 = vst.msk [vmem:[#allocation2 + $0x18] sm:$0xff] %vm254, %v204
        %259 = vst.msk [vmem:[#allocation2 + $0x20] sm:$0xff] %vm254, %v206
        %260 = vst.msk [vmem:[#allocation2 + $0x28] sm:$0xff] %vm254, %v207
        %261 = vst.msk [vmem:[#allocation2 + $0x30] sm:$0xff] %vm254, %v209
        %262 = vst.msk [vmem:[#allocation2 + $0x38] sm:$0xff] %vm254, %v210
        %263 = vst.msk [vmem:[#allocation2 + $0x40] sm:$0xff] %vm254, %v212
        %264 = vst.msk [vmem:[#allocation2 + $0x48] sm:$0xff] %vm254, %v213
        %265 = vst.msk [vmem:[#allocation2 + $0x50] sm:$0xff] %vm254, %v215
        %266 = vst.msk [vmem:[#allocation2 + $0x58] sm:$0xff] %vm254, %v216
        %267 = vst.msk [vmem:[#allocation2 + $0x60] sm:$0xff] %vm254, %v218
        %268 = vst.msk [vmem:[#allocation2 + $0x68] sm:$0xff] %vm254, %v219
        %269 = vst.msk [vmem:[#allocation2 + $0x70] sm:$0xff] %vm254, %v221
        %270 = vst.msk [vmem:[#allocation2 + $0x78] sm:$0xff] %vm254, %v222
        %271 = vst.msk [vmem:[#allocation2 + $0x80] sm:$0xff] %vm254, %v224
        %272 = vst.msk [vmem:[#allocation2 + $0x88] sm:$0xff] %vm254, %v225
        %273 = vst.msk [vmem:[#allocation2 + $0x90] sm:$0xff] %vm254, %v227
        %274 = vst.msk [vmem:[#allocation2 + $0x98] sm:$0xff] %vm254, %v228
        %275 = vst.msk [vmem:[#allocation2 + $0xa0] sm:$0xff] %vm254, %v230
        %276 = vst.msk [vmem:[#allocation2 + $0xa8] sm:$0xff] %vm254, %v231
        %277 = vst.msk [vmem:[#allocation2 + $0xb0] sm:$0xff] %vm254, %v233
        %278 = vst.msk [vmem:[#allocation2 + $0xb8] sm:$0xff] %vm254, %v234
        %279 = vst.msk [vmem:[#allocation2 + $0xc0] sm:$0xff] %vm254, %v236
        %280 = vst.msk [vmem:[#allocation2 + $0xc8] sm:$0xff] %vm254, %v237
        %281 = vst.msk [vmem:[#allocation2 + $0xd0] sm:$0xff] %vm254, %v239
        %282 = vst.msk [vmem:[#allocation2 + $0xd8] sm:$0xff] %vm254, %v240
        %283 = vst.msk [vmem:[#allocation2 + $0xe0] sm:$0xff] %vm254, %v242
        %284 = vst.msk [vmem:[#allocation2 + $0xe8] sm:$0xff] %vm254, %v243
        %285 = vst.msk [vmem:[#allocation2 + $0xf0] sm:$0xff] %vm254, %v245
        %286 = vst.msk [vmem:[#allocation2 + $0xf8] sm:$0xff] %vm254, %v246
        %vm335 = vcmask 1046528
        %v336 = vrot.slane %v200, 1
        %v337 = vrot.slane %v201, 1
        %v338 = vsel %vm335, %v336, %v337
        %v339 = vrot.slane %v202, 1
        %v340 = vsel %vm335, %v337, %v339
        %v341 = vrot.slane %v203, 1
        %v342 = vrot.slane %v204, 1
        %v343 = vsel %vm335, %v341, %v342
        %v344 = vrot.slane %v205, 1
        %v345 = vsel %vm335, %v342, %v344
        %v346 = vrot.slane %v206, 1
        %v347 = vrot.slane %v207, 1
        %v348 = vsel %vm335, %v346, %v347
        %v349 = vrot.slane %v208, 1
        %v350 = vsel %vm335, %v347, %v349
        %v351 = vrot.slane %v209, 1
        %v352 = vrot.slane %v210, 1
        %v353 = vsel %vm335, %v351, %v352
        %v354 = vrot.slane %v211, 1
        %v355 = vsel %vm335, %v352, %v354
        %v356 = vrot.slane %v212, 1
        %v357 = vrot.slane %v213, 1
        %v358 = vsel %vm335, %v356, %v357
        %v359 = vrot.slane %v214, 1
        %v360 = vsel %vm335, %v357, %v359
        %v361 = vrot.slane %v215, 1
        %v362 = vrot.slane %v216, 1
        %v363 = vsel %vm335, %v361, %v362
        %v364 = vrot.slane %v217, 1
        %v365 = vsel %vm335, %v362, %v364
        %v366 = vrot.slane %v218, 1
        %v367 = vrot.slane %v219, 1
        %v368 = vsel %vm335, %v366, %v367
        %v369 = vrot.slane %v220, 1
        %v370 = vsel %vm335, %v367, %v369
        %v371 = vrot.slane %v221, 1
        %v372 = vrot.slane %v222, 1
        %v373 = vsel %vm335, %v371, %v372
        %v374 = vrot.slane %v223, 1
        %v375 = vsel %vm335, %v372, %v374
        %v376 = vrot.slane %v224, 1
        %v377 = vrot.slane %v225, 1
        %v378 = vsel %vm335, %v376, %v377
        %v379 = vrot.slane %v226, 1
        %v380 = vsel %vm335, %v377, %v379
        %v381 = vrot.slane %v227, 1
        %v382 = vrot.slane %v228, 1
        %v383 = vsel %vm335, %v381, %v382
        %v384 = vrot.slane %v229, 1
        %v385 = vsel %vm335, %v382, %v384
        %v386 = vrot.slane %v230, 1
        %v387 = vrot.slane %v231, 1
        %v388 = vsel %vm335, %v386, %v387
        %v389 = vrot.slane %v232, 1
        %v390 = vsel %vm335, %v387, %v389
        %v391 = vrot.slane %v233, 1
        %v392 = vrot.slane %v234, 1
        %v393 = vsel %vm335, %v391, %v392
        %v394 = vrot.slane %v235, 1
        %v395 = vsel %vm335, %v392, %v394
        %v396 = vrot.slane %v236, 1
        %v397 = vrot.slane %v237, 1
        %v398 = vsel %vm335, %v396, %v397
        %v399 = vrot.slane %v238, 1
        %v400 = vsel %vm335, %v397, %v399
        %v401 = vrot.slane %v239, 1
        %v402 = vrot.slane %v240, 1
        %v403 = vsel %vm335, %v401, %v402
        %v404 = vrot.slane %v241, 1
        %v405 = vsel %vm335, %v402, %v404
        %v406 = vrot.slane %v242, 1
        %v407 = vrot.slane %v243, 1
        %v408 = vsel %vm335, %v406, %v407
        %v409 = vrot.slane %v244, 1
        %v410 = vsel %vm335, %v407, %v409
        %v411 = vrot.slane %v245, 1
        %v412 = vrot.slane %v246, 1
        %v413 = vsel %vm335, %v411, %v412
        %v414 = vrot.slane %v247, 1
        %v415 = vsel %vm335, %v412, %v414
        %416 = vrot.lane.b32.xlu0 %v338, 4
        %v417 = vpop.permute.xlu0 %416
        %418 = vrot.lane.b32.xlu0 %v340, 4
        %v419 = vpop.permute.xlu0 %418
        %420 = vrot.lane.b32.xlu0 %v343, 4
        %v421 = vpop.permute.xlu0 %420
        %422 = vrot.lane.b32.xlu0 %v345, 4
        %v423 = vpop.permute.xlu0 %422
        %424 = vrot.lane.b32.xlu0 %v348, 4
        %v425 = vpop.permute.xlu0 %424
        %426 = vrot.lane.b32.xlu0 %v350, 4
        %v427 = vpop.permute.xlu0 %426
        %428 = vrot.lane.b32.xlu0 %v353, 4
        %v429 = vpop.permute.xlu0 %428
        %430 = vrot.lane.b32.xlu0 %v355, 4
        %v431 = vpop.permute.xlu0 %430
        %432 = vrot.lane.b32.xlu0 %v358, 4
        %v433 = vpop.permute.xlu0 %432
        %434 = vrot.lane.b32.xlu0 %v360, 4
        %v435 = vpop.permute.xlu0 %434
        %436 = vrot.lane.b32.xlu0 %v363, 4
        %v437 = vpop.permute.xlu0 %436
        %438 = vrot.lane.b32.xlu0 %v365, 4
        %v439 = vpop.permute.xlu0 %438
        %440 = vrot.lane.b32.xlu0 %v368, 4
        %v441 = vpop.permute.xlu0 %440
        %442 = vrot.lane.b32.xlu0 %v370, 4
        %v443 = vpop.permute.xlu0 %442
        %444 = vrot.lane.b32.xlu0 %v373, 4
        %v445 = vpop.permute.xlu0 %444
        %446 = vrot.lane.b32.xlu0 %v375, 4
        %v447 = vpop.permute.xlu0 %446
        %448 = vrot.lane.b32.xlu0 %v378, 4
        %v449 = vpop.permute.xlu0 %448
        %450 = vrot.lane.b32.xlu0 %v380, 4
        %v451 = vpop.permute.xlu0 %450
        %452 = vrot.lane.b32.xlu0 %v383, 4
        %v453 = vpop.permute.xlu0 %452
        %454 = vrot.lane.b32.xlu0 %v385, 4
        %v455 = vpop.permute.xlu0 %454
        %456 = vrot.lane.b32.xlu0 %v388, 4
        %v457 = vpop.permute.xlu0 %456
        %458 = vrot.lane.b32.xlu0 %v390, 4
        %v459 = vpop.permute.xlu0 %458
        %460 = vrot.lane.b32.xlu0 %v393, 4
        %v461 = vpop.permute.xlu0 %460
        %462 = vrot.lane.b32.xlu0 %v395, 4
        %v463 = vpop.permute.xlu0 %462
        %464 = vrot.lane.b32.xlu0 %v398, 4
        %v465 = vpop.permute.xlu0 %464
        %466 = vrot.lane.b32.xlu0 %v400, 4
        %v467 = vpop.permute.xlu0 %466
        %468 = vrot.lane.b32.xlu0 %v403, 4
        %v469 = vpop.permute.xlu0 %468
        %470 = vrot.lane.b32.xlu0 %v405, 4
        %v471 = vpop.permute.xlu0 %470
        %472 = vrot.lane.b32.xlu0 %v408, 4
        %v473 = vpop.permute.xlu0 %472
        %474 = vrot.lane.b32.xlu0 %v410, 4
        %v475 = vpop.permute.xlu0 %474
        %476 = vrot.lane.b32.xlu0 %v413, 4
        %v477 = vpop.permute.xlu0 %476
        %478 = vrot.lane.b32.xlu0 %v415, 4
        %v479 = vpop.permute.xlu0 %478
        %vm512 = vcmask 64544
        %513 = vst.msk [vmem:[#allocation2] sm:$0xff] %vm512, %v417
        %514 = vst.msk [vmem:[#allocation2 + $0x8] sm:$0xff] %vm512, %v419
        %515 = vst.msk [vmem:[#allocation2 + $0x10] sm:$0xff] %vm512, %v421
        %516 = vst.msk [vmem:[#allocation2 + $0x18] sm:$0xff] %vm512, %v423
        %517 = vst.msk [vmem:[#allocation2 + $0x20] sm:$0xff] %vm512, %v425
        %518 = vst.msk [vmem:[#allocation2 + $0x28] sm:$0xff] %vm512, %v427
        %519 = vst.msk [vmem:[#allocation2 + $0x30] sm:$0xff] %vm512, %v429
        %520 = vst.msk [vmem:[#allocation2 + $0x38] sm:$0xff] %vm512, %v431
        %521 = vst.msk [vmem:[#allocation2 + $0x40] sm:$0xff] %vm512, %v433
        %522 = vst.msk [vmem:[#allocation2 + $0x48] sm:$0xff] %vm512, %v435
        %523 = vst.msk [vmem:[#allocation2 + $0x50] sm:$0xff] %vm512, %v437
        %524 = vst.msk [vmem:[#allocation2 + $0x58] sm:$0xff] %vm512, %v439
        %525 = vst.msk [vmem:[#allocation2 + $0x60] sm:$0xff] %vm512, %v441
        %526 = vst.msk [vmem:[#allocation2 + $0x68] sm:$0xff] %vm512, %v443
        %527 = vst.msk [vmem:[#allocation2 + $0x70] sm:$0xff] %vm512, %v445
        %528 = vst.msk [vmem:[#allocation2 + $0x78] sm:$0xff] %vm512, %v447
        %529 = vst.msk [vmem:[#allocation2 + $0x80] sm:$0xff] %vm512, %v449
        %530 = vst.msk [vmem:[#allocation2 + $0x88] sm:$0xff] %vm512, %v451
        %531 = vst.msk [vmem:[#allocation2 + $0x90] sm:$0xff] %vm512, %v453
        %532 = vst.msk [vmem:[#allocation2 + $0x98] sm:$0xff] %vm512, %v455
        %533 = vst.msk [vmem:[#allocation2 + $0xa0] sm:$0xff] %vm512, %v457
        %534 = vst.msk [vmem:[#allocation2 + $0xa8] sm:$0xff] %vm512, %v459
        %535 = vst.msk [vmem:[#allocation2 + $0xb0] sm:$0xff] %vm512, %v461
        %536 = vst.msk [vmem:[#allocation2 + $0xb8] sm:$0xff] %vm512, %v463
        %537 = vst.msk [vmem:[#allocation2 + $0xc0] sm:$0xff] %vm512, %v465
        %538 = vst.msk [vmem:[#allocation2 + $0xc8] sm:$0xff] %vm512, %v467
        %539 = vst.msk [vmem:[#allocation2 + $0xd0] sm:$0xff] %vm512, %v469
        %540 = vst.msk [vmem:[#allocation2 + $0xd8] sm:$0xff] %vm512, %v471
        %541 = vst.msk [vmem:[#allocation2 + $0xe0] sm:$0xff] %vm512, %v473
        %542 = vst.msk [vmem:[#allocation2 + $0xe8] sm:$0xff] %vm512, %v475
        %543 = vst.msk [vmem:[#allocation2 + $0xf0] sm:$0xff] %vm512, %v477
        %544 = vst.msk [vmem:[#allocation2 + $0xf8] sm:$0xff] %vm512, %v479
        %vm545 = vcmask 1045504
        %v546 = vrot.slane %v200, 2
        %v547 = vrot.slane %v201, 2
        %v548 = vsel %vm545, %v546, %v547
        %v549 = vrot.slane %v202, 2
        %v550 = vsel %vm545, %v547, %v549
        %v551 = vrot.slane %v203, 2
        %v552 = vrot.slane %v204, 2
        %v553 = vsel %vm545, %v551, %v552
        %v554 = vrot.slane %v205, 2
        %v555 = vsel %vm545, %v552, %v554
        %v556 = vrot.slane %v206, 2
        %v557 = vrot.slane %v207, 2
        %v558 = vsel %vm545, %v556, %v557
        %v559 = vrot.slane %v208, 2
        %v560 = vsel %vm545, %v557, %v559
        %v561 = vrot.slane %v209, 2
        %v562 = vrot.slane %v210, 2
        %v563 = vsel %vm545, %v561, %v562
        %v564 = vrot.slane %v211, 2
        %v565 = vsel %vm545, %v562, %v564
        %v566 = vrot.slane %v212, 2
        %v567 = vrot.slane %v213, 2
        %v568 = vsel %vm545, %v566, %v567
        %v569 = vrot.slane %v214, 2
        %v570 = vsel %vm545, %v567, %v569
        %v571 = vrot.slane %v215, 2
        %v572 = vrot.slane %v216, 2
        %v573 = vsel %vm545, %v571, %v572
        %v574 = vrot.slane %v217, 2
        %v575 = vsel %vm545, %v572, %v574
        %v576 = vrot.slane %v218, 2
        %v577 = vrot.slane %v219, 2
        %v578 = vsel %vm545, %v576, %v577
        %v579 = vrot.slane %v220, 2
        %v580 = vsel %vm545, %v577, %v579
        %v581 = vrot.slane %v221, 2
        %v582 = vrot.slane %v222, 2
        %v583 = vsel %vm545, %v581, %v582
        %v584 = vrot.slane %v223, 2
        %v585 = vsel %vm545, %v582, %v584
        %v586 = vrot.slane %v224, 2
        %v587 = vrot.slane %v225, 2
        %v588 = vsel %vm545, %v586, %v587
        %v589 = vrot.slane %v226, 2
        %v590 = vsel %vm545, %v587, %v589
        %v591 = vrot.slane %v227, 2
        %v592 = vrot.slane %v228, 2
        %v593 = vsel %vm545, %v591, %v592
        %v594 = vrot.slane %v229, 2
        %v595 = vsel %vm545, %v592, %v594
        %v596 = vrot.slane %v230, 2
        %v597 = vrot.slane %v231, 2
        %v598 = vsel %vm545, %v596, %v597
        %v599 = vrot.slane %v232, 2
        %v600 = vsel %vm545, %v597, %v599
        %v601 = vrot.slane %v233, 2
        %v602 = vrot.slane %v234, 2
        %v603 = vsel %vm545, %v601, %v602
        %v604 = vrot.slane %v235, 2
        %v605 = vsel %vm545, %v602, %v604
        %v606 = vrot.slane %v236, 2
        %v607 = vrot.slane %v237, 2
        %v608 = vsel %vm545, %v606, %v607
        %v609 = vrot.slane %v238, 2
        %v610 = vsel %vm545, %v607, %v609
        %v611 = vrot.slane %v239, 2
        %v612 = vrot.slane %v240, 2
        %v613 = vsel %vm545, %v611, %v612
        %v614 = vrot.slane %v241, 2
        %v615 = vsel %vm545, %v612, %v614
        %v616 = vrot.slane %v242, 2
        %v617 = vrot.slane %v243, 2
        %v618 = vsel %vm545, %v616, %v617
        %v619 = vrot.slane %v244, 2
        %v620 = vsel %vm545, %v617, %v619
        %v621 = vrot.slane %v245, 2
        %v622 = vrot.slane %v246, 2
        %v623 = vsel %vm545, %v621, %v622
        %v624 = vrot.slane %v247, 2
        %v625 = vsel %vm545, %v622, %v624
        %626 = vrot.lane.b32.xlu0 %v548, 8
        %v627 = vpop.permute.xlu0 %626
        %628 = vrot.lane.b32.xlu0 %v550, 8
        %v629 = vpop.permute.xlu0 %628
        %630 = vrot.lane.b32.xlu0 %v553, 8
        %v631 = vpop.permute.xlu0 %630
        %632 = vrot.lane.b32.xlu0 %v555, 8
        %v633 = vpop.permute.xlu0 %632
        %634 = vrot.lane.b32.xlu0 %v558, 8
        %v635 = vpop.permute.xlu0 %634
        %636 = vrot.lane.b32.xlu0 %v560, 8
        %v637 = vpop.permute.xlu0 %636
        %638 = vrot.lane.b32.xlu0 %v563, 8
        %v639 = vpop.permute.xlu0 %638
        %640 = vrot.lane.b32.xlu0 %v565, 8
        %v641 = vpop.permute.xlu0 %640
        %642 = vrot.lane.b32.xlu0 %v568, 8
        %v643 = vpop.permute.xlu0 %642
        %644 = vrot.lane.b32.xlu0 %v570, 8
        %v645 = vpop.permute.xlu0 %644
        %646 = vrot.lane.b32.xlu0 %v573, 8
        %v647 = vpop.permute.xlu0 %646
        %648 = vrot.lane.b32.xlu0 %v575, 8
        %v649 = vpop.permute.xlu0 %648
        %650 = vrot.lane.b32.xlu0 %v578, 8
        %v651 = vpop.permute.xlu0 %650
        %652 = vrot.lane.b32.xlu0 %v580, 8
        %v653 = vpop.permute.xlu0 %652
        %654 = vrot.lane.b32.xlu0 %v583, 8
        %v655 = vpop.permute.xlu0 %654
        %656 = vrot.lane.b32.xlu0 %v585, 8
        %v657 = vpop.permute.xlu0 %656
        %658 = vrot.lane.b32.xlu0 %v588, 8
        %v659 = vpop.permute.xlu0 %658
        %660 = vrot.lane.b32.xlu0 %v590, 8
        %v661 = vpop.permute.xlu0 %660
        %662 = vrot.lane.b32.xlu0 %v593, 8
        %v663 = vpop.permute.xlu0 %662
        %664 = vrot.lane.b32.xlu0 %v595, 8
        %v665 = vpop.permute.xlu0 %664
        %666 = vrot.lane.b32.xlu0 %v598, 8
        %v667 = vpop.permute.xlu0 %666
        %668 = vrot.lane.b32.xlu0 %v600, 8
        %v669 = vpop.permute.xlu0 %668
        %670 = vrot.lane.b32.xlu0 %v603, 8
        %v671 = vpop.permute.xlu0 %670
        %672 = vrot.lane.b32.xlu0 %v605, 8
        %v673 = vpop.permute.xlu0 %672
        %674 = vrot.lane.b32.xlu0 %v608, 8
        %v675 = vpop.permute.xlu0 %674
        %676 = vrot.lane.b32.xlu0 %v610, 8
        %v677 = vpop.permute.xlu0 %676
        %678 = vrot.lane.b32.xlu0 %v613, 8
        %v679 = vpop.permute.xlu0 %678
        %680 = vrot.lane.b32.xlu0 %v615, 8
        %v681 = vpop.permute.xlu0 %680
        %682 = vrot.lane.b32.xlu0 %v618, 8
        %v683 = vpop.permute.xlu0 %682
        %684 = vrot.lane.b32.xlu0 %v620, 8
        %v685 = vpop.permute.xlu0 %684
        %686 = vrot.lane.b32.xlu0 %v623, 8
        %v687 = vpop.permute.xlu0 %686
        %688 = vrot.lane.b32.xlu0 %v625, 8
        %v689 = vpop.permute.xlu0 %688
        %vm722 = vcmask 97344
        %723 = vst.msk [vmem:[#allocation2] sm:$0xff] %vm722, %v627
        %724 = vst.msk [vmem:[#allocation2 + $0x8] sm:$0xff] %vm722, %v629
        %725 = vst.msk [vmem:[#allocation2 + $0x10] sm:$0xff] %vm722, %v631
        %726 = vst.msk [vmem:[#allocation2 + $0x18] sm:$0xff] %vm722, %v633
        %727 = vst.msk [vmem:[#allocation2 + $0x20] sm:$0xff] %vm722, %v635
        %728 = vst.msk [vmem:[#allocation2 + $0x28] sm:$0xff] %vm722, %v637
        %729 = vst.msk [vmem:[#allocation2 + $0x30] sm:$0xff] %vm722, %v639
        %730 = vst.msk [vmem:[#allocation2 + $0x38] sm:$0xff] %vm722, %v641
        %731 = vst.msk [vmem:[#allocation2 + $0x40] sm:$0xff] %vm722, %v643
        %732 = vst.msk [vmem:[#allocation2 + $0x48] sm:$0xff] %vm722, %v645
        %733 = vst.msk [vmem:[#allocation2 + $0x50] sm:$0xff] %vm722, %v647
        %734 = vst.msk [vmem:[#allocation2 + $0x58] sm:$0xff] %vm722, %v649
        %735 = vst.msk [vmem:[#allocation2 + $0x60] sm:$0xff] %vm722, %v651
        %736 = vst.msk [vmem:[#allocation2 + $0x68] sm:$0xff] %vm722, %v653
        %737 = vst.msk [vmem:[#allocation2 + $0x70] sm:$0xff] %vm722, %v655
        %738 = vst.msk [vmem:[#allocation2 + $0x78] sm:$0xff] %vm722, %v657
        %739 = vst.msk [vmem:[#allocation2 + $0x80] sm:$0xff] %vm722, %v659
        %740 = vst.msk [vmem:[#allocation2 + $0x88] sm:$0xff] %vm722, %v661
        %741 = vst.msk [vmem:[#allocation2 + $0x90] sm:$0xff] %vm722, %v663
        %742 = vst.msk [vmem:[#allocation2 + $0x98] sm:$0xff] %vm722, %v665
        %743 = vst.msk [vmem:[#allocation2 + $0xa0] sm:$0xff] %vm722, %v667
        %744 = vst.msk [vmem:[#allocation2 + $0xa8] sm:$0xff] %vm722, %v669
        %745 = vst.msk [vmem:[#allocation2 + $0xb0] sm:$0xff] %vm722, %v671
        %746 = vst.msk [vmem:[#allocation2 + $0xb8] sm:$0xff] %vm722, %v673
        %747 = vst.msk [vmem:[#allocation2 + $0xc0] sm:$0xff] %vm722, %v675
        %748 = vst.msk [vmem:[#allocation2 + $0xc8] sm:$0xff] %vm722, %v677
        %749 = vst.msk [vmem:[#allocation2 + $0xd0] sm:$0xff] %vm722, %v679
        %750 = vst.msk [vmem:[#allocation2 + $0xd8] sm:$0xff] %vm722, %v681
        %751 = vst.msk [vmem:[#allocation2 + $0xe0] sm:$0xff] %vm722, %v683
        %752 = vst.msk [vmem:[#allocation2 + $0xe8] sm:$0xff] %vm722, %v685
        %753 = vst.msk [vmem:[#allocation2 + $0xf0] sm:$0xff] %vm722, %v687
        %754 = vst.msk [vmem:[#allocation2 + $0xf8] sm:$0xff] %vm722, %v689
        %757 = vrot.lane.b32.xlu0 %v203, 12
        %v758 = vpop.permute.xlu0 %757
        %759 = vrot.lane.b32.xlu0 %v204, 12
        %v760 = vpop.permute.xlu0 %759
        %761 = vrot.lane.b32.xlu0 %v206, 12
        %v762 = vpop.permute.xlu0 %761
        %763 = vrot.lane.b32.xlu0 %v207, 12
        %v764 = vpop.permute.xlu0 %763
        %765 = vrot.lane.b32.xlu0 %v209, 12
        %v766 = vpop.permute.xlu0 %765
        %767 = vrot.lane.b32.xlu0 %v210, 12
        %v768 = vpop.permute.xlu0 %767
        %769 = vrot.lane.b32.xlu0 %v212, 12
        %v770 = vpop.permute.xlu0 %769
        %771 = vrot.lane.b32.xlu0 %v213, 12
        %v772 = vpop.permute.xlu0 %771
        %773 = vrot.lane.b32.xlu0 %v215, 12
        %v774 = vpop.permute.xlu0 %773
        %775 = vrot.lane.b32.xlu0 %v216, 12
        %v776 = vpop.permute.xlu0 %775
        %777 = vrot.lane.b32.xlu0 %v218, 12
        %v778 = vpop.permute.xlu0 %777
        %779 = vrot.lane.b32.xlu0 %v219, 12
        %v780 = vpop.permute.xlu0 %779
        %781 = vrot.lane.b32.xlu0 %v221, 12
        %v782 = vpop.permute.xlu0 %781
        %783 = vrot.lane.b32.xlu0 %v222, 12
        %v784 = vpop.permute.xlu0 %783
        %785 = vrot.lane.b32.xlu0 %v224, 12
        %v786 = vpop.permute.xlu0 %785
        %787 = vrot.lane.b32.xlu0 %v225, 12
        %v788 = vpop.permute.xlu0 %787
        %789 = vrot.lane.b32.xlu0 %v227, 12
        %v790 = vpop.permute.xlu0 %789
        %791 = vrot.lane.b32.xlu0 %v228, 12
        %v792 = vpop.permute.xlu0 %791
        %793 = vrot.lane.b32.xlu0 %v230, 12
        %v794 = vpop.permute.xlu0 %793
        %795 = vrot.lane.b32.xlu0 %v231, 12
        %v796 = vpop.permute.xlu0 %795
        %797 = vrot.lane.b32.xlu0 %v233, 12
        %v798 = vpop.permute.xlu0 %797
        %799 = vrot.lane.b32.xlu0 %v234, 12
        %v800 = vpop.permute.xlu0 %799
        %801 = vrot.lane.b32.xlu0 %v236, 12
        %v802 = vpop.permute.xlu0 %801
        %803 = vrot.lane.b32.xlu0 %v237, 12
        %v804 = vpop.permute.xlu0 %803
        %805 = vrot.lane.b32.xlu0 %v239, 12
        %v806 = vpop.permute.xlu0 %805
        %807 = vrot.lane.b32.xlu0 %v240, 12
        %v808 = vpop.permute.xlu0 %807
        %809 = vrot.lane.b32.xlu0 %v242, 12
        %v810 = vpop.permute.xlu0 %809
        %811 = vrot.lane.b32.xlu0 %v243, 12
        %v812 = vpop.permute.xlu0 %811
        %813 = vrot.lane.b32.xlu0 %v245, 12
        %v814 = vpop.permute.xlu0 %813
        %815 = vrot.lane.b32.xlu0 %v246, 12
        %v816 = vpop.permute.xlu0 %815
        %817 = vrot.lane.b32.xlu0 %v248, 12
        %v818 = vpop.permute.xlu0 %817
        %819 = vrot.lane.b32.xlu0 %v249, 12
        %v820 = vpop.permute.xlu0 %819
        %vm853 = vcmask 130144
        %854 = vst.msk [vmem:[#allocation2] sm:$0xff] %vm853, %v758
        %855 = vst.msk [vmem:[#allocation2 + $0x8] sm:$0xff] %vm853, %v760
        %856 = vst.msk [vmem:[#allocation2 + $0x10] sm:$0xff] %vm853, %v762
        %857 = vst.msk [vmem:[#allocation2 + $0x18] sm:$0xff] %vm853, %v764
        %858 = vst.msk [vmem:[#allocation2 + $0x20] sm:$0xff] %vm853, %v766
        %859 = vst.msk [vmem:[#allocation2 + $0x28] sm:$0xff] %vm853, %v768
        %860 = vst.msk [vmem:[#allocation2 + $0x30] sm:$0xff] %vm853, %v770
        %861 = vst.msk [vmem:[#allocation2 + $0x38] sm:$0xff] %vm853, %v772
        %862 = vst.msk [vmem:[#allocation2 + $0x40] sm:$0xff] %vm853, %v774
        %863 = vst.msk [vmem:[#allocation2 + $0x48] sm:$0xff] %vm853, %v776
        %864 = vst.msk [vmem:[#allocation2 + $0x50] sm:$0xff] %vm853, %v778
        %865 = vst.msk [vmem:[#allocation2 + $0x58] sm:$0xff] %vm853, %v780
        %866 = vst.msk [vmem:[#allocation2 + $0x60] sm:$0xff] %vm853, %v782
        %867 = vst.msk [vmem:[#allocation2 + $0x68] sm:$0xff] %vm853, %v784
        %868 = vst.msk [vmem:[#allocation2 + $0x70] sm:$0xff] %vm853, %v786
        %869 = vst.msk [vmem:[#allocation2 + $0x78] sm:$0xff] %vm853, %v788
        %870 = vst.msk [vmem:[#allocation2 + $0x80] sm:$0xff] %vm853, %v790
        %871 = vst.msk [vmem:[#allocation2 + $0x88] sm:$0xff] %vm853, %v792
        %872 = vst.msk [vmem:[#allocation2 + $0x90] sm:$0xff] %vm853, %v794
        %873 = vst.msk [vmem:[#allocation2 + $0x98] sm:$0xff] %vm853, %v796
        %874 = vst.msk [vmem:[#allocation2 + $0xa0] sm:$0xff] %vm853, %v798
        %875 = vst.msk [vmem:[#allocation2 + $0xa8] sm:$0xff] %vm853, %v800
        %876 = vst.msk [vmem:[#allocation2 + $0xb0] sm:$0xff] %vm853, %v802
        %877 = vst.msk [vmem:[#allocation2 + $0xb8] sm:$0xff] %vm853, %v804
        %878 = vst.msk [vmem:[#allocation2 + $0xc0] sm:$0xff] %vm853, %v806
        %879 = vst.msk [vmem:[#allocation2 + $0xc8] sm:$0xff] %vm853, %v808
        %880 = vst.msk [vmem:[#allocation2 + $0xd0] sm:$0xff] %vm853, %v810
        %881 = vst.msk [vmem:[#allocation2 + $0xd8] sm:$0xff] %vm853, %v812
        %882 = vst.msk [vmem:[#allocation2 + $0xe0] sm:$0xff] %vm853, %v814
        %883 = vst.msk [vmem:[#allocation2 + $0xe8] sm:$0xff] %vm853, %v816
        %884 = vst.msk [vmem:[#allocation2 + $0xf0] sm:$0xff] %vm853, %v818
        %885 = vst.msk [vmem:[#allocation2 + $0xf8] sm:$0xff] %vm853, %v820
        %v887 = vrot.slane %v248, 1
        %v888 = vrot.slane %v249, 1
        %v889 = vsel %vm335, %v887, %v888
        %v890 = vrot.slane %v250, 1
        %v891 = vsel %vm335, %v888, %v890
        %892 = vrot.lane.b32.xlu0 %v343, 16
        %v893 = vpop.permute.xlu0 %892
        %894 = vrot.lane.b32.xlu0 %v345, 16
        %v895 = vpop.permute.xlu0 %894
        %896 = vrot.lane.b32.xlu0 %v348, 16
        %v897 = vpop.permute.xlu0 %896
        %898 = vrot.lane.b32.xlu0 %v350, 16
        %v899 = vpop.permute.xlu0 %898
        %900 = vrot.lane.b32.xlu0 %v353, 16
        %v901 = vpop.permute.xlu0 %900
        %902 = vrot.lane.b32.xlu0 %v355, 16
        %v903 = vpop.permute.xlu0 %902
        %904 = vrot.lane.b32.xlu0 %v358, 16
        %v905 = vpop.permute.xlu0 %904
        %906 = vrot.lane.b32.xlu0 %v360, 16
        %v907 = vpop.permute.xlu0 %906
        %908 = vrot.lane.b32.xlu0 %v363, 16
        %v909 = vpop.permute.xlu0 %908
        %910 = vrot.lane.b32.xlu0 %v365, 16
        %v911 = vpop.permute.xlu0 %910
        %912 = vrot.lane.b32.xlu0 %v368, 16
        %v913 = vpop.permute.xlu0 %912
        %914 = vrot.lane.b32.xlu0 %v370, 16
        %v915 = vpop.permute.xlu0 %914
        %916 = vrot.lane.b32.xlu0 %v373, 16
        %v917 = vpop.permute.xlu0 %916
        %918 = vrot.lane.b32.xlu0 %v375, 16
        %v919 = vpop.permute.xlu0 %918
        %920 = vrot.lane.b32.xlu0 %v378, 16
        %v921 = vpop.permute.xlu0 %920
        %922 = vrot.lane.b32.xlu0 %v380, 16
        %v923 = vpop.permute.xlu0 %922
        %924 = vrot.lane.b32.xlu0 %v383, 16
        %v925 = vpop.permute.xlu0 %924
        %926 = vrot.lane.b32.xlu0 %v385, 16
        %v927 = vpop.permute.xlu0 %926
        %928 = vrot.lane.b32.xlu0 %v388, 16
        %v929 = vpop.permute.xlu0 %928
        %930 = vrot.lane.b32.xlu0 %v390, 16
        %v931 = vpop.permute.xlu0 %930
        %932 = vrot.lane.b32.xlu0 %v393, 16
        %v933 = vpop.permute.xlu0 %932
        %934 = vrot.lane.b32.xlu0 %v395, 16
        %v935 = vpop.permute.xlu0 %934
        %936 = vrot.lane.b32.xlu0 %v398, 16
        %v937 = vpop.permute.xlu0 %936
        %938 = vrot.lane.b32.xlu0 %v400, 16
        %v939 = vpop.permute.xlu0 %938
        %940 = vrot.lane.b32.xlu0 %v403, 16
        %v941 = vpop.permute.xlu0 %940
        %942 = vrot.lane.b32.xlu0 %v405, 16
        %v943 = vpop.permute.xlu0 %942
        %944 = vrot.lane.b32.xlu0 %v408, 16
        %v945 = vpop.permute.xlu0 %944
        %946 = vrot.lane.b32.xlu0 %v410, 16
        %v947 = vpop.permute.xlu0 %946
        %948 = vrot.lane.b32.xlu0 %v413, 16
        %v949 = vpop.permute.xlu0 %948
        %950 = vrot.lane.b32.xlu0 %v415, 16
        %v951 = vpop.permute.xlu0 %950
        %952 = vrot.lane.b32.xlu0 %v889, 16
        %v953 = vpop.permute.xlu0 %952
        %954 = vrot.lane.b32.xlu0 %v891, 16
        %v955 = vpop.permute.xlu0 %954
        %vm988 = vcmask 162944
        %989 = vst.msk [vmem:[#allocation2] sm:$0xff] %vm988, %v893
        %990 = vst.msk [vmem:[#allocation2 + $0x8] sm:$0xff] %vm988, %v895
        %991 = vst.msk [vmem:[#allocation2 + $0x10] sm:$0xff] %vm988, %v897
        %992 = vst.msk [vmem:[#allocation2 + $0x18] sm:$0xff] %vm988, %v899
        %993 = vst.msk [vmem:[#allocation2 + $0x20] sm:$0xff] %vm988, %v901
        %994 = vst.msk [vmem:[#allocation2 + $0x28] sm:$0xff] %vm988, %v903
        %995 = vst.msk [vmem:[#allocation2 + $0x30] sm:$0xff] %vm988, %v905
        %996 = vst.msk [vmem:[#allocation2 + $0x38] sm:$0xff] %vm988, %v907
        %997 = vst.msk [vmem:[#allocation2 + $0x40] sm:$0xff] %vm988, %v909
        %998 = vst.msk [vmem:[#allocation2 + $0x48] sm:$0xff] %vm988, %v911
        %999 = vst.msk [vmem:[#allocation2 + $0x50] sm:$0xff] %vm988, %v913
        %1000 = vst.msk [vmem:[#allocation2 + $0x58] sm:$0xff] %vm988, %v915
        %1001 = vst.msk [vmem:[#allocation2 + $0x60] sm:$0xff] %vm988, %v917
        %1002 = vst.msk [vmem:[#allocation2 + $0x68] sm:$0xff] %vm988, %v919
        %1003 = vst.msk [vmem:[#allocation2 + $0x70] sm:$0xff] %vm988, %v921
        %1004 = vst.msk [vmem:[#allocation2 + $0x78] sm:$0xff] %vm988, %v923
        %1005 = vst.msk [vmem:[#allocation2 + $0x80] sm:$0xff] %vm988, %v925
        %1006 = vst.msk [vmem:[#allocation2 + $0x88] sm:$0xff] %vm988, %v927
        %1007 = vst.msk [vmem:[#allocation2 + $0x90] sm:$0xff] %vm988, %v929
        %1008 = vst.msk [vmem:[#allocation2 + $0x98] sm:$0xff] %vm988, %v931
        %1009 = vst.msk [vmem:[#allocation2 + $0xa0] sm:$0xff] %vm988, %v933
        %1010 = vst.msk [vmem:[#allocation2 + $0xa8] sm:$0xff] %vm988, %v935
        %1011 = vst.msk [vmem:[#allocation2 + $0xb0] sm:$0xff] %vm988, %v937
        %1012 = vst.msk [vmem:[#allocation2 + $0xb8] sm:$0xff] %vm988, %v939
        %1013 = vst.msk [vmem:[#allocation2 + $0xc0] sm:$0xff] %vm988, %v941
        %1014 = vst.msk [vmem:[#allocation2 + $0xc8] sm:$0xff] %vm988, %v943
        %1015 = vst.msk [vmem:[#allocation2 + $0xd0] sm:$0xff] %vm988, %v945
        %1016 = vst.msk [vmem:[#allocation2 + $0xd8] sm:$0xff] %vm988, %v947
        %1017 = vst.msk [vmem:[#allocation2 + $0xe0] sm:$0xff] %vm988, %v949
        %1018 = vst.msk [vmem:[#allocation2 + $0xe8] sm:$0xff] %vm988, %v951
        %1019 = vst.msk [vmem:[#allocation2 + $0xf0] sm:$0xff] %vm988, %v953
        %1020 = vst.msk [vmem:[#allocation2 + $0xf8] sm:$0xff] %vm988, %v955
        %v1021 = vrot.slane %v248, 2
        %v1022 = vrot.slane %v249, 2
        %v1023 = vsel %vm545, %v1021, %v1022
        %v1024 = vrot.slane %v250, 2
        %v1025 = vsel %vm545, %v1022, %v1024
        %1026 = vrot.lane.b32.xlu0 %v553, 20
        %v1027 = vpop.permute.xlu0 %1026
        %1028 = vrot.lane.b32.xlu0 %v555, 20
        %v1029 = vpop.permute.xlu0 %1028
        %1030 = vrot.lane.b32.xlu0 %v558, 20
        %v1031 = vpop.permute.xlu0 %1030
        %1032 = vrot.lane.b32.xlu0 %v560, 20
        %v1033 = vpop.permute.xlu0 %1032
        %1034 = vrot.lane.b32.xlu0 %v563, 20
        %v1035 = vpop.permute.xlu0 %1034
        %1036 = vrot.lane.b32.xlu0 %v565, 20
        %v1037 = vpop.permute.xlu0 %1036
        %1038 = vrot.lane.b32.xlu0 %v568, 20
        %v1039 = vpop.permute.xlu0 %1038
        %1040 = vrot.lane.b32.xlu0 %v570, 20
        %v1041 = vpop.permute.xlu0 %1040
        %1042 = vrot.lane.b32.xlu0 %v573, 20
        %v1043 = vpop.permute.xlu0 %1042
        %1044 = vrot.lane.b32.xlu0 %v575, 20
        %v1045 = vpop.permute.xlu0 %1044
        %1046 = vrot.lane.b32.xlu0 %v578, 20
        %v1047 = vpop.permute.xlu0 %1046
        %1048 = vrot.lane.b32.xlu0 %v580, 20
        %v1049 = vpop.permute.xlu0 %1048
        %1050 = vrot.lane.b32.xlu0 %v583, 20
        %v1051 = vpop.permute.xlu0 %1050
        %1052 = vrot.lane.b32.xlu0 %v585, 20
        %v1053 = vpop.permute.xlu0 %1052
        %1054 = vrot.lane.b32.xlu0 %v588, 20
        %v1055 = vpop.permute.xlu0 %1054
        %1056 = vrot.lane.b32.xlu0 %v590, 20
        %v1057 = vpop.permute.xlu0 %1056
        %1058 = vrot.lane.b32.xlu0 %v593, 20
        %v1059 = vpop.permute.xlu0 %1058
        %1060 = vrot.lane.b32.xlu0 %v595, 20
        %v1061 = vpop.permute.xlu0 %1060
        %1062 = vrot.lane.b32.xlu0 %v598, 20
        %v1063 = vpop.permute.xlu0 %1062
        %1064 = vrot.lane.b32.xlu0 %v600, 20
        %v1065 = vpop.permute.xlu0 %1064
        %1066 = vrot.lane.b32.xlu0 %v603, 20
        %v1067 = vpop.permute.xlu0 %1066
        %1068 = vrot.lane.b32.xlu0 %v605, 20
        %v1069 = vpop.permute.xlu0 %1068
        %1070 = vrot.lane.b32.xlu0 %v608, 20
        %v1071 = vpop.permute.xlu0 %1070
        %1072 = vrot.lane.b32.xlu0 %v610, 20
        %v1073 = vpop.permute.xlu0 %1072
        %1074 = vrot.lane.b32.xlu0 %v613, 20
        %v1075 = vpop.permute.xlu0 %1074
        %1076 = vrot.lane.b32.xlu0 %v615, 20
        %v1077 = vpop.permute.xlu0 %1076
        %1078 = vrot.lane.b32.xlu0 %v618, 20
        %v1079 = vpop.permute.xlu0 %1078
        %1080 = vrot.lane.b32.xlu0 %v620, 20
        %v1081 = vpop.permute.xlu0 %1080
        %1082 = vrot.lane.b32.xlu0 %v623, 20
        %v1083 = vpop.permute.xlu0 %1082
        %1084 = vrot.lane.b32.xlu0 %v625, 20
        %v1085 = vpop.permute.xlu0 %1084
        %1086 = vrot.lane.b32.xlu0 %v1023, 20
        %v1087 = vpop.permute.xlu0 %1086
        %1088 = vrot.lane.b32.xlu0 %v1025, 20
        %v1089 = vpop.permute.xlu0 %1088
        %vm1122 = vcmask 195744
        %1123 = vst.msk [vmem:[#allocation2] sm:$0xff] %vm1122, %v1027
        %1124 = vst.msk [vmem:[#allocation2 + $0x8] sm:$0xff] %vm1122, %v1029
        %1125 = vst.msk [vmem:[#allocation2 + $0x10] sm:$0xff] %vm1122, %v1031
        %1126 = vst.msk [vmem:[#allocation2 + $0x18] sm:$0xff] %vm1122, %v1033
        %1127 = vst.msk [vmem:[#allocation2 + $0x20] sm:$0xff] %vm1122, %v1035
        %1128 = vst.msk [vmem:[#allocation2 + $0x28] sm:$0xff] %vm1122, %v1037
        %1129 = vst.msk [vmem:[#allocation2 + $0x30] sm:$0xff] %vm1122, %v1039
        %1130 = vst.msk [vmem:[#allocation2 + $0x38] sm:$0xff] %vm1122, %v1041
        %1131 = vst.msk [vmem:[#allocation2 + $0x40] sm:$0xff] %vm1122, %v1043
        %1132 = vst.msk [vmem:[#allocation2 + $0x48] sm:$0xff] %vm1122, %v1045
        %1133 = vst.msk [vmem:[#allocation2 + $0x50] sm:$0xff] %vm1122, %v1047
        %1134 = vst.msk [vmem:[#allocation2 + $0x58] sm:$0xff] %vm1122, %v1049
        %1135 = vst.msk [vmem:[#allocation2 + $0x60] sm:$0xff] %vm1122, %v1051
        %1136 = vst.msk [vmem:[#allocation2 + $0x68] sm:$0xff] %vm1122, %v1053
        %1137 = vst.msk [vmem:[#allocation2 + $0x70] sm:$0xff] %vm1122, %v1055
        %1138 = vst.msk [vmem:[#allocation2 + $0x78] sm:$0xff] %vm1122, %v1057
        %1139 = vst.msk [vmem:[#allocation2 + $0x80] sm:$0xff] %vm1122, %v1059
        %1140 = vst.msk [vmem:[#allocation2 + $0x88] sm:$0xff] %vm1122, %v1061
        %1141 = vst.msk [vmem:[#allocation2 + $0x90] sm:$0xff] %vm1122, %v1063
        %1142 = vst.msk [vmem:[#allocation2 + $0x98] sm:$0xff] %vm1122, %v1065
        %1143 = vst.msk [vmem:[#allocation2 + $0xa0] sm:$0xff] %vm1122, %v1067
        %1144 = vst.msk [vmem:[#allocation2 + $0xa8] sm:$0xff] %vm1122, %v1069
        %1145 = vst.msk [vmem:[#allocation2 + $0xb0] sm:$0xff] %vm1122, %v1071
        %1146 = vst.msk [vmem:[#allocation2 + $0xb8] sm:$0xff] %vm1122, %v1073
        %1147 = vst.msk [vmem:[#allocation2 + $0xc0] sm:$0xff] %vm1122, %v1075
        %1148 = vst.msk [vmem:[#allocation2 + $0xc8] sm:$0xff] %vm1122, %v1077
        %1149 = vst.msk [vmem:[#allocation2 + $0xd0] sm:$0xff] %vm1122, %v1079
        %1150 = vst.msk [vmem:[#allocation2 + $0xd8] sm:$0xff] %vm1122, %v1081
        %1151 = vst.msk [vmem:[#allocation2 + $0xe0] sm:$0xff] %vm1122, %v1083
        %1152 = vst.msk [vmem:[#allocation2 + $0xe8] sm:$0xff] %vm1122, %v1085
        %1153 = vst.msk [vmem:[#allocation2 + $0xf0] sm:$0xff] %vm1122, %v1087
        %1154 = vst.msk [vmem:[#allocation2 + $0xf8] sm:$0xff] %vm1122, %v1089
        %1157 = vrot.lane.b32.xlu0 %v206, 24
        %v1158 = vpop.permute.xlu0 %1157
        %1159 = vrot.lane.b32.xlu0 %v207, 24
        %v1160 = vpop.permute.xlu0 %1159
        %1161 = vrot.lane.b32.xlu0 %v209, 24
        %v1162 = vpop.permute.xlu0 %1161
        %1163 = vrot.lane.b32.xlu0 %v210, 24
        %v1164 = vpop.permute.xlu0 %1163
        %1165 = vrot.lane.b32.xlu0 %v212, 24
        %v1166 = vpop.permute.xlu0 %1165
        %1167 = vrot.lane.b32.xlu0 %v213, 24
        %v1168 = vpop.permute.xlu0 %1167
        %1169 = vrot.lane.b32.xlu0 %v215, 24
        %v1170 = vpop.permute.xlu0 %1169
        %1171 = vrot.lane.b32.xlu0 %v216, 24
        %v1172 = vpop.permute.xlu0 %1171
        %1173 = vrot.lane.b32.xlu0 %v218, 24
        %v1174 = vpop.permute.xlu0 %1173
        %1175 = vrot.lane.b32.xlu0 %v219, 24
        %v1176 = vpop.permute.xlu0 %1175
        %1177 = vrot.lane.b32.xlu0 %v221, 24
        %v1178 = vpop.permute.xlu0 %1177
        %1179 = vrot.lane.b32.xlu0 %v222, 24
        %v1180 = vpop.permute.xlu0 %1179
        %1181 = vrot.lane.b32.xlu0 %v224, 24
        %v1182 = vpop.permute.xlu0 %1181
        %1183 = vrot.lane.b32.xlu0 %v225, 24
        %v1184 = vpop.permute.xlu0 %1183
        %1185 = vrot.lane.b32.xlu0 %v227, 24
        %v1186 = vpop.permute.xlu0 %1185
        %1187 = vrot.lane.b32.xlu0 %v228, 24
        %v1188 = vpop.permute.xlu0 %1187
        %1189 = vrot.lane.b32.xlu0 %v230, 24
        %v1190 = vpop.permute.xlu0 %1189
        %1191 = vrot.lane.b32.xlu0 %v231, 24
        %v1192 = vpop.permute.xlu0 %1191
        %1193 = vrot.lane.b32.xlu0 %v233, 24
        %v1194 = vpop.permute.xlu0 %1193
        %1195 = vrot.lane.b32.xlu0 %v234, 24
        %v1196 = vpop.permute.xlu0 %1195
        %1197 = vrot.lane.b32.xlu0 %v236, 24
        %v1198 = vpop.permute.xlu0 %1197
        %1199 = vrot.lane.b32.xlu0 %v237, 24
        %v1200 = vpop.permute.xlu0 %1199
        %1201 = vrot.lane.b32.xlu0 %v239, 24
        %v1202 = vpop.permute.xlu0 %1201
        %1203 = vrot.lane.b32.xlu0 %v240, 24
        %v1204 = vpop.permute.xlu0 %1203
        %1205 = vrot.lane.b32.xlu0 %v242, 24
        %v1206 = vpop.permute.xlu0 %1205
        %1207 = vrot.lane.b32.xlu0 %v243, 24
        %v1208 = vpop.permute.xlu0 %1207
        %1209 = vrot.lane.b32.xlu0 %v245, 24
        %v1210 = vpop.permute.xlu0 %1209
        %1211 = vrot.lane.b32.xlu0 %v246, 24
        %v1212 = vpop.permute.xlu0 %1211
        %1213 = vrot.lane.b32.xlu0 %v248, 24
        %v1214 = vpop.permute.xlu0 %1213
        %1215 = vrot.lane.b32.xlu0 %v249, 24
        %v1216 = vpop.permute.xlu0 %1215
        %1217 = vrot.lane.b32.xlu0 %v251, 24
        %v1218 = vpop.permute.xlu0 %1217
        %1219 = vrot.lane.b32.xlu0 %v252, 24
        %v1220 = vpop.permute.xlu0 %1219
        %vm1253 = vcmask 228544
        %1254 = vst.msk [vmem:[#allocation2] sm:$0xff] %vm1253, %v1158
        %1255 = vst.msk [vmem:[#allocation2 + $0x8] sm:$0xff] %vm1253, %v1160
        %1256 = vst.msk [vmem:[#allocation2 + $0x10] sm:$0xff] %vm1253, %v1162
        %1257 = vst.msk [vmem:[#allocation2 + $0x18] sm:$0xff] %vm1253, %v1164
        %1258 = vst.msk [vmem:[#allocation2 + $0x20] sm:$0xff] %vm1253, %v1166
        %1259 = vst.msk [vmem:[#allocation2 + $0x28] sm:$0xff] %vm1253, %v1168
        %1260 = vst.msk [vmem:[#allocation2 + $0x30] sm:$0xff] %vm1253, %v1170
        %1261 = vst.msk [vmem:[#allocation2 + $0x38] sm:$0xff] %vm1253, %v1172
        %1262 = vst.msk [vmem:[#allocation2 + $0x40] sm:$0xff] %vm1253, %v1174
        %1263 = vst.msk [vmem:[#allocation2 + $0x48] sm:$0xff] %vm1253, %v1176
        %1264 = vst.msk [vmem:[#allocation2 + $0x50] sm:$0xff] %vm1253, %v1178
        %1265 = vst.msk [vmem:[#allocation2 + $0x58] sm:$0xff] %vm1253, %v1180
        %1266 = vst.msk [vmem:[#allocation2 + $0x60] sm:$0xff] %vm1253, %v1182
        %1267 = vst.msk [vmem:[#allocation2 + $0x68] sm:$0xff] %vm1253, %v1184
        %1268 = vst.msk [vmem:[#allocation2 + $0x70] sm:$0xff] %vm1253, %v1186
        %1269 = vst.msk [vmem:[#allocation2 + $0x78] sm:$0xff] %vm1253, %v1188
        %1270 = vst.msk [vmem:[#allocation2 + $0x80] sm:$0xff] %vm1253, %v1190
        %1271 = vst.msk [vmem:[#allocation2 + $0x88] sm:$0xff] %vm1253, %v1192
        %1272 = vst.msk [vmem:[#allocation2 + $0x90] sm:$0xff] %vm1253, %v1194
        %1273 = vst.msk [vmem:[#allocation2 + $0x98] sm:$0xff] %vm1253, %v1196
        %1274 = vst.msk [vmem:[#allocation2 + $0xa0] sm:$0xff] %vm1253, %v1198
        %1275 = vst.msk [vmem:[#allocation2 + $0xa8] sm:$0xff] %vm1253, %v1200
        %1276 = vst.msk [vmem:[#allocation2 + $0xb0] sm:$0xff] %vm1253, %v1202
        %1277 = vst.msk [vmem:[#allocation2 + $0xb8] sm:$0xff] %vm1253, %v1204
        %1278 = vst.msk [vmem:[#allocation2 + $0xc0] sm:$0xff] %vm1253, %v1206
        %1279 = vst.msk [vmem:[#allocation2 + $0xc8] sm:$0xff] %vm1253, %v1208
        %1280 = vst.msk [vmem:[#allocation2 + $0xd0] sm:$0xff] %vm1253, %v1210
        %1281 = vst.msk [vmem:[#allocation2 + $0xd8] sm:$0xff] %vm1253, %v1212
        %1282 = vst.msk [vmem:[#allocation2 + $0xe0] sm:$0xff] %vm1253, %v1214
        %1283 = vst.msk [vmem:[#allocation2 + $0xe8] sm:$0xff] %vm1253, %v1216
        %1284 = vst.msk [vmem:[#allocation2 + $0xf0] sm:$0xff] %vm1253, %v1218
        %1285 = vst.msk [vmem:[#allocation2 + $0xf8] sm:$0xff] %vm1253, %v1220
        %v1287 = vrot.slane %v251, 1
        %v1288 = vrot.slane %v252, 1
        %v1289 = vsel %vm335, %v1287, %v1288
        %v1290 = vrot.slane %v253, 1
        %v1291 = vsel %vm335, %v1288, %v1290
        %1292 = vrot.lane.b32.xlu0 %v348, 28
        %v1293 = vpop.permute.xlu0 %1292
        %1294 = vrot.lane.b32.xlu0 %v350, 28
        %v1295 = vpop.permute.xlu0 %1294
        %1296 = vrot.lane.b32.xlu0 %v353, 28
        %v1297 = vpop.permute.xlu0 %1296
        %1298 = vrot.lane.b32.xlu0 %v355, 28
        %v1299 = vpop.permute.xlu0 %1298
        %1300 = vrot.lane.b32.xlu0 %v358, 28
        %v1301 = vpop.permute.xlu0 %1300
        %1302 = vrot.lane.b32.xlu0 %v360, 28
        %v1303 = vpop.permute.xlu0 %1302
        %1304 = vrot.lane.b32.xlu0 %v363, 28
        %v1305 = vpop.permute.xlu0 %1304
        %1306 = vrot.lane.b32.xlu0 %v365, 28
        %v1307 = vpop.permute.xlu0 %1306
        %1308 = vrot.lane.b32.xlu0 %v368, 28
        %v1309 = vpop.permute.xlu0 %1308
        %1310 = vrot.lane.b32.xlu0 %v370, 28
        %v1311 = vpop.permute.xlu0 %1310
        %1312 = vrot.lane.b32.xlu0 %v373, 28
        %v1313 = vpop.permute.xlu0 %1312
        %1314 = vrot.lane.b32.xlu0 %v375, 28
        %v1315 = vpop.permute.xlu0 %1314
        %1316 = vrot.lane.b32.xlu0 %v378, 28
        %v1317 = vpop.permute.xlu0 %1316
        %1318 = vrot.lane.b32.xlu0 %v380, 28
        %v1319 = vpop.permute.xlu0 %1318
        %1320 = vrot.lane.b32.xlu0 %v383, 28
        %v1321 = vpop.permute.xlu0 %1320
        %1322 = vrot.lane.b32.xlu0 %v385, 28
        %v1323 = vpop.permute.xlu0 %1322
        %1324 = vrot.lane.b32.xlu0 %v388, 28
        %v1325 = vpop.permute.xlu0 %1324
        %1326 = vrot.lane.b32.xlu0 %v390, 28
        %v1327 = vpop.permute.xlu0 %1326
        %1328 = vrot.lane.b32.xlu0 %v393, 28
        %v1329 = vpop.permute.xlu0 %1328
        %1330 = vrot.lane.b32.xlu0 %v395, 28
        %v1331 = vpop.permute.xlu0 %1330
        %1332 = vrot.lane.b32.xlu0 %v398, 28
        %v1333 = vpop.permute.xlu0 %1332
        %1334 = vrot.lane.b32.xlu0 %v400, 28
        %v1335 = vpop.permute.xlu0 %1334
        %1336 = vrot.lane.b32.xlu0 %v403, 28
        %v1337 = vpop.permute.xlu0 %1336
        %1338 = vrot.lane.b32.xlu0 %v405, 28
        %v1339 = vpop.permute.xlu0 %1338
        %1340 = vrot.lane.b32.xlu0 %v408, 28
        %v1341 = vpop.permute.xlu0 %1340
        %1342 = vrot.lane.b32.xlu0 %v410, 28
        %v1343 = vpop.permute.xlu0 %1342
        %1344 = vrot.lane.b32.xlu0 %v413, 28
        %v1345 = vpop.permute.xlu0 %1344
        %1346 = vrot.lane.b32.xlu0 %v415, 28
        %v1347 = vpop.permute.xlu0 %1346
        %1348 = vrot.lane.b32.xlu0 %v889, 28
        %v1349 = vpop.permute.xlu0 %1348
        %1350 = vrot.lane.b32.xlu0 %v891, 28
        %v1351 = vpop.permute.xlu0 %1350
        %1352 = vrot.lane.b32.xlu0 %v1289, 28
        %v1353 = vpop.permute.xlu0 %1352
        %1354 = vrot.lane.b32.xlu0 %v1291, 28
        %v1355 = vpop.permute.xlu0 %1354
        %vm1388 = vcmask 261344
        %1389 = vst.msk [vmem:[#allocation2] sm:$0xff] %vm1388, %v1293
        %1390 = vst.msk [vmem:[#allocation2 + $0x8] sm:$0xff] %vm1388, %v1295
        %1391 = vst.msk [vmem:[#allocation2 + $0x10] sm:$0xff] %vm1388, %v1297
        %1392 = vst.msk [vmem:[#allocation2 + $0x18] sm:$0xff] %vm1388, %v1299
        %1393 = vst.msk [vmem:[#allocation2 + $0x20] sm:$0xff] %vm1388, %v1301
        %1394 = vst.msk [vmem:[#allocation2 + $0x28] sm:$0xff] %vm1388, %v1303
        %1395 = vst.msk [vmem:[#allocation2 + $0x30] sm:$0xff] %vm1388, %v1305
        %1396 = vst.msk [vmem:[#allocation2 + $0x38] sm:$0xff] %vm1388, %v1307
        %1397 = vst.msk [vmem:[#allocation2 + $0x40] sm:$0xff] %vm1388, %v1309
        %1398 = vst.msk [vmem:[#allocation2 + $0x48] sm:$0xff] %vm1388, %v1311
        %1399 = vst.msk [vmem:[#allocation2 + $0x50] sm:$0xff] %vm1388, %v1313
        %1400 = vst.msk [vmem:[#allocation2 + $0x58] sm:$0xff] %vm1388, %v1315
        %1401 = vst.msk [vmem:[#allocation2 + $0x60] sm:$0xff] %vm1388, %v1317
        %1402 = vst.msk [vmem:[#allocation2 + $0x68] sm:$0xff] %vm1388, %v1319
        %1403 = vst.msk [vmem:[#allocation2 + $0x70] sm:$0xff] %vm1388, %v1321
        %1404 = vst.msk [vmem:[#allocation2 + $0x78] sm:$0xff] %vm1388, %v1323
        %1405 = vst.msk [vmem:[#allocation2 + $0x80] sm:$0xff] %vm1388, %v1325
        %1406 = vst.msk [vmem:[#allocation2 + $0x88] sm:$0xff] %vm1388, %v1327
        %1407 = vst.msk [vmem:[#allocation2 + $0x90] sm:$0xff] %vm1388, %v1329
        %1408 = vst.msk [vmem:[#allocation2 + $0x98] sm:$0xff] %vm1388, %v1331
        %1409 = vst.msk [vmem:[#allocation2 + $0xa0] sm:$0xff] %vm1388, %v1333
        %1410 = vst.msk [vmem:[#allocation2 + $0xa8] sm:$0xff] %vm1388, %v1335
        %1411 = vst.msk [vmem:[#allocation2 + $0xb0] sm:$0xff] %vm1388, %v1337
        %1412 = vst.msk [vmem:[#allocation2 + $0xb8] sm:$0xff] %vm1388, %v1339
        %1413 = vst.msk [vmem:[#allocation2 + $0xc0] sm:$0xff] %vm1388, %v1341
        %1414 = vst.msk [vmem:[#allocation2 + $0xc8] sm:$0xff] %vm1388, %v1343
        %1415 = vst.msk [vmem:[#allocation2 + $0xd0] sm:$0xff] %vm1388, %v1345
        %1416 = vst.msk [vmem:[#allocation2 + $0xd8] sm:$0xff] %vm1388, %v1347
        %1417 = vst.msk [vmem:[#allocation2 + $0xe0] sm:$0xff] %vm1388, %v1349
        %1418 = vst.msk [vmem:[#allocation2 + $0xe8] sm:$0xff] %vm1388, %v1351
        %1419 = vst.msk [vmem:[#allocation2 + $0xf0] sm:$0xff] %vm1388, %v1353
        %1420 = vst.msk [vmem:[#allocation2 + $0xf8] sm:$0xff] %vm1388, %v1355
        %v1421 = vrot.slane %v251, 2
        %v1422 = vrot.slane %v252, 2
        %v1423 = vsel %vm545, %v1421, %v1422
        %v1424 = vrot.slane %v253, 2
        %v1425 = vsel %vm545, %v1422, %v1424
        %1426 = vrot.lane.b32.xlu0 %v558, 32
        %v1427 = vpop.permute.xlu0 %1426
        %1428 = vrot.lane.b32.xlu0 %v560, 32
        %v1429 = vpop.permute.xlu0 %1428
        %1430 = vrot.lane.b32.xlu0 %v563, 32
        %v1431 = vpop.permute.xlu0 %1430
        %1432 = vrot.lane.b32.xlu0 %v565, 32
        %v1433 = vpop.permute.xlu0 %1432
        %1434 = vrot.lane.b32.xlu0 %v568, 32
        %v1435 = vpop.permute.xlu0 %1434
        %1436 = vrot.lane.b32.xlu0 %v570, 32
        %v1437 = vpop.permute.xlu0 %1436
        %1438 = vrot.lane.b32.xlu0 %v573, 32
        %v1439 = vpop.permute.xlu0 %1438
        %1440 = vrot.lane.b32.xlu0 %v575, 32
        %v1441 = vpop.permute.xlu0 %1440
        %1442 = vrot.lane.b32.xlu0 %v578, 32
        %v1443 = vpop.permute.xlu0 %1442
        %1444 = vrot.lane.b32.xlu0 %v580, 32
        %v1445 = vpop.permute.xlu0 %1444
        %1446 = vrot.lane.b32.xlu0 %v583, 32
        %v1447 = vpop.permute.xlu0 %1446
        %1448 = vrot.lane.b32.xlu0 %v585, 32
        %v1449 = vpop.permute.xlu0 %1448
        %1450 = vrot.lane.b32.xlu0 %v588, 32
        %v1451 = vpop.permute.xlu0 %1450
        %1452 = vrot.lane.b32.xlu0 %v590, 32
        %v1453 = vpop.permute.xlu0 %1452
        %1454 = vrot.lane.b32.xlu0 %v593, 32
        %v1455 = vpop.permute.xlu0 %1454
        %1456 = vrot.lane.b32.xlu0 %v595, 32
        %v1457 = vpop.permute.xlu0 %1456
        %1458 = vrot.lane.b32.xlu0 %v598, 32
        %v1459 = vpop.permute.xlu0 %1458
        %1460 = vrot.lane.b32.xlu0 %v600, 32
        %v1461 = vpop.permute.xlu0 %1460
        %1462 = vrot.lane.b32.xlu0 %v603, 32
        %v1463 = vpop.permute.xlu0 %1462
        %1464 = vrot.lane.b32.xlu0 %v605, 32
        %v1465 = vpop.permute.xlu0 %1464
        %1466 = vrot.lane.b32.xlu0 %v608, 32
        %v1467 = vpop.permute.xlu0 %1466
        %1468 = vrot.lane.b32.xlu0 %v610, 32
        %v1469 = vpop.permute.xlu0 %1468
        %1470 = vrot.lane.b32.xlu0 %v613, 32
        %v1471 = vpop.permute.xlu0 %1470
        %1472 = vrot.lane.b32.xlu0 %v615, 32
        %v1473 = vpop.permute.xlu0 %1472
        %1474 = vrot.lane.b32.xlu0 %v618, 32
        %v1475 = vpop.permute.xlu0 %1474
        %1476 = vrot.lane.b32.xlu0 %v620, 32
        %v1477 = vpop.permute.xlu0 %1476
        %1478 = vrot.lane.b32.xlu0 %v623, 32
        %v1479 = vpop.permute.xlu0 %1478
        %1480 = vrot.lane.b32.xlu0 %v625, 32
        %v1481 = vpop.permute.xlu0 %1480
        %1482 = vrot.lane.b32.xlu0 %v1023, 32
        %v1483 = vpop.permute.xlu0 %1482
        %1484 = vrot.lane.b32.xlu0 %v1025, 32
        %v1485 = vpop.permute.xlu0 %1484
        %1486 = vrot.lane.b32.xlu0 %v1423, 32
        %v1487 = vpop.permute.xlu0 %1486
        %1488 = vrot.lane.b32.xlu0 %v1425, 32
        %v1489 = vpop.permute.xlu0 %1488
        %vm1522 = vcmask 294144
        %1523 = vst.msk [vmem:[#allocation2] sm:$0xff] %vm1522, %v1427
        %1524 = vst.msk [vmem:[#allocation2 + $0x8] sm:$0xff] %vm1522, %v1429
        %1525 = vst.msk [vmem:[#allocation2 + $0x10] sm:$0xff] %vm1522, %v1431
        %1526 = vst.msk [vmem:[#allocation2 + $0x18] sm:$0xff] %vm1522, %v1433
        %1527 = vst.msk [vmem:[#allocation2 + $0x20] sm:$0xff] %vm1522, %v1435
        %1528 = vst.msk [vmem:[#allocation2 + $0x28] sm:$0xff] %vm1522, %v1437
        %1529 = vst.msk [vmem:[#allocation2 + $0x30] sm:$0xff] %vm1522, %v1439
        %1530 = vst.msk [vmem:[#allocation2 + $0x38] sm:$0xff] %vm1522, %v1441
        %1531 = vst.msk [vmem:[#allocation2 + $0x40] sm:$0xff] %vm1522, %v1443
        %1532 = vst.msk [vmem:[#allocation2 + $0x48] sm:$0xff] %vm1522, %v1445
        %1533 = vst.msk [vmem:[#allocation2 + $0x50] sm:$0xff] %vm1522, %v1447
        %1534 = vst.msk [vmem:[#allocation2 + $0x58] sm:$0xff] %vm1522, %v1449
        %1535 = vst.msk [vmem:[#allocation2 + $0x60] sm:$0xff] %vm1522, %v1451
        %1536 = vst.msk [vmem:[#allocation2 + $0x68] sm:$0xff] %vm1522, %v1453
        %1537 = vst.msk [vmem:[#allocation2 + $0x70] sm:$0xff] %vm1522, %v1455
        %1538 = vst.msk [vmem:[#allocation2 + $0x78] sm:$0xff] %vm1522, %v1457
        %1539 = vst.msk [vmem:[#allocation2 + $0x80] sm:$0xff] %vm1522, %v1459
        %1540 = vst.msk [vmem:[#allocation2 + $0x88] sm:$0xff] %vm1522, %v1461
        %1541 = vst.msk [vmem:[#allocation2 + $0x90] sm:$0xff] %vm1522, %v1463
        %1542 = vst.msk [vmem:[#allocation2 + $0x98] sm:$0xff] %vm1522, %v1465
        %1543 = vst.msk [vmem:[#allocation2 + $0xa0] sm:$0xff] %vm1522, %v1467
        %1544 = vst.msk [vmem:[#allocation2 + $0xa8] sm:$0xff] %vm1522, %v1469
        %1545 = vst.msk [vmem:[#allocation2 + $0xb0] sm:$0xff] %vm1522, %v1471
        %1546 = vst.msk [vmem:[#allocation2 + $0xb8] sm:$0xff] %vm1522, %v1473
        %1547 = vst.msk [vmem:[#allocation2 + $0xc0] sm:$0xff] %vm1522, %v1475
        %1548 = vst.msk [vmem:[#allocation2 + $0xc8] sm:$0xff] %vm1522, %v1477
        %1549 = vst.msk [vmem:[#allocation2 + $0xd0] sm:$0xff] %vm1522, %v1479
        %1550 = vst.msk [vmem:[#allocation2 + $0xd8] sm:$0xff] %vm1522, %v1481
        %1551 = vst.msk [vmem:[#allocation2 + $0xe0] sm:$0xff] %vm1522, %v1483
        %1552 = vst.msk [vmem:[#allocation2 + $0xe8] sm:$0xff] %vm1522, %v1485
        %1553 = vst.msk [vmem:[#allocation2 + $0xf0] sm:$0xff] %vm1522, %v1487
        %1554 = vst.msk [vmem:[#allocation2 + $0xf8] sm:$0xff] %vm1522, %v1489
        %v1555 = vld [vmem:[#allocation2] sm:$0xff]
        %v1556 = vld [vmem:[#allocation2 + $0x8] sm:$0xff]
        %v1557 = vld [vmem:[#allocation2 + $0x10] sm:$0xff]
        %v1558 = vld [vmem:[#allocation2 + $0x18] sm:$0xff]
        %v1559 = vld [vmem:[#allocation2 + $0x20] sm:$0xff]
        %v1560 = vld [vmem:[#allocation2 + $0x28] sm:$0xff]
        %v1561 = vld [vmem:[#allocation2 + $0x30] sm:$0xff]
        %v1562 = vld [vmem:[#allocation2 + $0x38] sm:$0xff]
        %v1563 = vld [vmem:[#allocation2 + $0x40] sm:$0xff]
        %v1564 = vld [vmem:[#allocation2 + $0x48] sm:$0xff]
        %v1565 = vld [vmem:[#allocation2 + $0x50] sm:$0xff]
        %v1566 = vld [vmem:[#allocation2 + $0x58] sm:$0xff]
        %v1567 = vld [vmem:[#allocation2 + $0x60] sm:$0xff]
        %v1568 = vld [vmem:[#allocation2 + $0x68] sm:$0xff]
        %v1569 = vld [vmem:[#allocation2 + $0x70] sm:$0xff]
        %v1570 = vld [vmem:[#allocation2 + $0x78] sm:$0xff]
        %v1571 = vld [vmem:[#allocation2 + $0x80] sm:$0xff]
        %v1572 = vld [vmem:[#allocation2 + $0x88] sm:$0xff]
        %v1573 = vld [vmem:[#allocation2 + $0x90] sm:$0xff]
        %v1574 = vld [vmem:[#allocation2 + $0x98] sm:$0xff]
        %v1575 = vld [vmem:[#allocation2 + $0xa0] sm:$0xff]
        %v1576 = vld [vmem:[#allocation2 + $0xa8] sm:$0xff]
        %v1577 = vld [vmem:[#allocation2 + $0xb0] sm:$0xff]
        %v1578 = vld [vmem:[#allocation2 + $0xb8] sm:$0xff]
        %v1579 = vld [vmem:[#allocation2 + $0xc0] sm:$0xff]
        %v1580 = vld [vmem:[#allocation2 + $0xc8] sm:$0xff]
        %v1581 = vld [vmem:[#allocation2 + $0xd0] sm:$0xff]
        %v1582 = vld [vmem:[#allocation2 + $0xd8] sm:$0xff]
        %v1583 = vld [vmem:[#allocation2 + $0xe0] sm:$0xff]
        %v1584 = vld [vmem:[#allocation2 + $0xe8] sm:$0xff]
        %v1585 = vld [vmem:[#allocation2 + $0xf0] sm:$0xff]
        %v1586 = vld [vmem:[#allocation2 + $0xf8] sm:$0xff]
        %v1587 = vld [vmem:[%s1] sm:$0xff]
        %v1588 = vld [vmem:[%s1 + $0x8] sm:$0xff]
        %v1589 = vld [vmem:[%s1 + $0x10] sm:$0xff]
        %v1590 = vld [vmem:[%s1 + $0x18] sm:$0xff]
        %v1591 = vld [vmem:[%s1 + $0x20] sm:$0xf]
        %vm1592 = vcmask 293888
        %v1594 = vsel %vm1592, %v1555, 0
        %v1597 = vsel %vm1592, %v1556, 0
        %v1600 = vsel %vm1592, %v1557, 0
        %v1603 = vsel %vm1592, %v1558, 0
        %v1606 = vsel %vm1592, %v1559, 0
        %v1609 = vsel %vm1592, %v1560, 0
        %v1612 = vsel %vm1592, %v1561, 0
        %v1615 = vsel %vm1592, %v1562, 0
        %v1618 = vsel %vm1592, %v1563, 0
        %v1621 = vsel %vm1592, %v1564, 0
        %v1624 = vsel %vm1592, %v1565, 0
        %v1627 = vsel %vm1592, %v1566, 0
        %v1630 = vsel %vm1592, %v1567, 0
        %v1633 = vsel %vm1592, %v1568, 0
        %v1636 = vsel %vm1592, %v1569, 0
        %v1639 = vsel %vm1592, %v1570, 0
        %v1642 = vsel %vm1592, %v1571, 0
        %v1645 = vsel %vm1592, %v1572, 0
        %v1648 = vsel %vm1592, %v1573, 0
        %v1651 = vsel %vm1592, %v1574, 0
        %v1654 = vsel %vm1592, %v1575, 0
        %v1657 = vsel %vm1592, %v1576, 0
        %v1660 = vsel %vm1592, %v1577, 0
        %v1663 = vsel %vm1592, %v1578, 0
        %v1666 = vsel %vm1592, %v1579, 0
        %v1669 = vsel %vm1592, %v1580, 0
        %v1672 = vsel %vm1592, %v1581, 0
        %v1675 = vsel %vm1592, %v1582, 0
        %v1678 = vsel %vm1592, %v1583, 0
        %v1681 = vsel %vm1592, %v1584, 0
        %v1684 = vsel %vm1592, %v1585, 0
        %v1687 = vsel %vm1592, %v1586, 0
        %vm1689 = vcmask 1043456
        %v1691 = vsel %vm1689, %v1591, 0
        %1693 = vmatprep.subr.mxu0 0.0
        %1694 = vmatpush1.msra.mxu0 0.0
        %1695 = vmatprep.subr.mxu0 0.0
        %1696 = vmatpush1.msra.mxu0 0.0
        %1697 = vmatprep.subr.mxu0 0.0
        %1698 = vmatpush1.msra.mxu0 0.0
        %1699 = vmatprep.subr.mxu0 0.0
        %1700 = vmatpush1.msra.mxu0 0.0
        %1701 = vmatprep.subr.mxu0 0.0
        %1702 = vmatpush1.msra.mxu0 0.0
        %1703 = vmatprep.subr.mxu0 0.0
        %1704 = vmatpush1.msra.mxu0 0.0
        %1705 = vmatprep.subr.mxu0 0.0
        %1706 = vmatpush1.msra.mxu0 0.0
        %1707 = vmatprep.subr.mxu0 0.0
        %1708 = vmatpush1.msra.mxu0 0.0
        %1709 = vmatprep.subr.mxu0 0.0
        %1710 = vmatpush1.msra.mxu0 0.0
        %1711 = vmatprep.subr.mxu0 0.0
        %1712 = vmatpush1.msra.mxu0 0.0
        %1713 = vmatprep.subr.mxu0 0.0
        %1714 = vmatpush1.msra.mxu0 0.0
        %1715 = vmatprep.subr.mxu0 0.0
        %1716 = vmatpush1.msra.mxu0 %v1691
        %1717 = vmatprep.subr.mxu0 0.0
        %1718 = vmatpush1.msra.mxu0 %v1590
        %1719 = vmatprep.subr.mxu0 0.0
        %1720 = vmatpush1.msra.mxu0 %v1589
        %1721 = vmatprep.subr.mxu0 0.0
        %1722 = vmatpush1.msra.mxu0 %v1588
        %1723 = vmatprep.subr.mxu0 0.0
        %1724 = vmatpush1.msra.mxu0 %v1587
        %1725 = vmatprep.subr.mxu0 0.0
        %1726 = vmatpush2.msra.mxu0 0.0
        %1727 = vmatprep.subr.mxu0 0.0
        %1728 = vmatpush2.msra.mxu0 0.0
        %1729 = vmatprep.subr.mxu0 0.0
        %1730 = vmatpush2.msra.mxu0 0.0
        %1731 = vmatprep.subr.mxu0 0.0
        %1732 = vmatpush2.msra.mxu0 0.0
        %1733 = vmatprep.subr.mxu0 0.0
        %1734 = vmatpush2.msra.mxu0 0.0
        %1735 = vmatprep.subr.mxu0 0.0
        %1736 = vmatpush2.msra.mxu0 0.0
        %1737 = vmatprep.subr.mxu0 0.0
        %1738 = vmatpush2.msra.mxu0 0.0
        %1739 = vmatprep.subr.mxu0 0.0
        %1740 = vmatpush2.msra.mxu0 0.0
        %1741 = vmatprep.subr.mxu0 0.0
        %1742 = vmatpush2.msra.mxu0 0.0
        %1743 = vmatprep.subr.mxu0 0.0
        %1744 = vmatpush2.msra.mxu0 0.0
        %1745 = vmatprep.subr.mxu0 0.0
        %1746 = vmatpush2.msra.mxu0 0.0
        %1747 = vmatprep.subr.mxu0 0.0
        %1748 = vmatpush2.msra.mxu0 0.0
        %1749 = vmatprep.subr.mxu0 0.0
        %1750 = vmatpush2.msra.mxu0 0.0
        %1751 = vmatprep.subr.mxu0 0.0
        %1752 = vmatpush2.msra.mxu0 0.0
        %1753 = vmatprep.subr.mxu0 0.0
        %1754 = vmatpush2.msra.mxu0 0.0
        %1755 = vmatprep.subr.mxu0 0.0
        %1756 = vmatpush2.msra.mxu0 0.0
        %1757 = vmatprep.mubr.f32.mxu0 0.0
        %1758 = vmatmul.mubr.f32.gmra.mxu0 %v1594
        %v1759 = vpop.f32.mrf.mxu0
        %v1760 = vadd.f32 0.0, %v1759
        %v1761 = vpop.f32.mrf.mxu0
        %1762 = vmatprep.mubr.f32.mxu0 0.0
        %1763 = vmatmul.mubr.f32.gmra.mxu0 %v1597
        %v1764 = vpop.f32.mrf.mxu0
        %v1765 = vadd.f32 0.0, %v1764
        %v1766 = vpop.f32.mrf.mxu0
        %1767 = vmatprep.mubr.f32.mxu0 0.0
        %1768 = vmatmul.mubr.f32.gmra.mxu0 %v1600
        %v1769 = vpop.f32.mrf.mxu0
        %v1770 = vadd.f32 0.0, %v1769
        %v1771 = vpop.f32.mrf.mxu0
        %1772 = vmatprep.mubr.f32.mxu0 0.0
        %1773 = vmatmul.mubr.f32.gmra.mxu0 %v1603
        %v1774 = vpop.f32.mrf.mxu0
        %v1775 = vadd.f32 0.0, %v1774
        %v1776 = vpop.f32.mrf.mxu0
        %1777 = vmatprep.mubr.f32.mxu0 0.0
        %1778 = vmatmul.mubr.f32.gmra.mxu0 %v1606
        %v1779 = vpop.f32.mrf.mxu0
        %v1780 = vadd.f32 0.0, %v1779
        %v1781 = vpop.f32.mrf.mxu0
        %1782 = vmatprep.mubr.f32.mxu0 0.0
        %1783 = vmatmul.mubr.f32.gmra.mxu0 %v1609
        %v1784 = vpop.f32.mrf.mxu0
        %v1785 = vadd.f32 0.0, %v1784
        %v1786 = vpop.f32.mrf.mxu0
        %1787 = vmatprep.mubr.f32.mxu0 0.0
        %1788 = vmatmul.mubr.f32.gmra.mxu0 %v1612
        %v1789 = vpop.f32.mrf.mxu0
        %v1790 = vadd.f32 0.0, %v1789
        %v1791 = vpop.f32.mrf.mxu0
        %1792 = vmatprep.mubr.f32.mxu0 0.0
        %1793 = vmatmul.mubr.f32.gmra.mxu0 %v1615
        %v1794 = vpop.f32.mrf.mxu0
        %v1795 = vadd.f32 0.0, %v1794
        %v1796 = vpop.f32.mrf.mxu0
        %1797 = vmatprep.mubr.f32.mxu0 0.0
        %1798 = vmatmul.mubr.f32.gmra.mxu0 %v1618
        %v1799 = vpop.f32.mrf.mxu0
        %v1800 = vadd.f32 0.0, %v1799
        %v1801 = vpop.f32.mrf.mxu0
        %1802 = vmatprep.mubr.f32.mxu0 0.0
        %1803 = vmatmul.mubr.f32.gmra.mxu0 %v1621
        %v1804 = vpop.f32.mrf.mxu0
        %v1805 = vadd.f32 0.0, %v1804
        %v1806 = vpop.f32.mrf.mxu0
        %1807 = vmatprep.mubr.f32.mxu0 0.0
        %1808 = vmatmul.mubr.f32.gmra.mxu0 %v1624
        %v1809 = vpop.f32.mrf.mxu0
        %v1810 = vadd.f32 0.0, %v1809
        %v1811 = vpop.f32.mrf.mxu0
        %1812 = vmatprep.mubr.f32.mxu0 0.0
        %1813 = vmatmul.mubr.f32.gmra.mxu0 %v1627
        %v1814 = vpop.f32.mrf.mxu0
        %v1815 = vadd.f32 0.0, %v1814
        %v1816 = vpop.f32.mrf.mxu0
        %1817 = vmatprep.mubr.f32.mxu0 0.0
        %1818 = vmatmul.mubr.f32.gmra.mxu0 %v1630
        %v1819 = vpop.f32.mrf.mxu0
        %v1820 = vadd.f32 0.0, %v1819
        %v1821 = vpop.f32.mrf.mxu0
        %1822 = vmatprep.mubr.f32.mxu0 0.0
        %1823 = vmatmul.mubr.f32.gmra.mxu0 %v1633
        %v1824 = vpop.f32.mrf.mxu0
        %v1825 = vadd.f32 0.0, %v1824
        %v1826 = vpop.f32.mrf.mxu0
        %1827 = vmatprep.mubr.f32.mxu0 0.0
        %1828 = vmatmul.mubr.f32.gmra.mxu0 %v1636
        %v1829 = vpop.f32.mrf.mxu0
        %v1830 = vadd.f32 0.0, %v1829
        %v1831 = vpop.f32.mrf.mxu0
        %1832 = vmatprep.mubr.f32.mxu0 0.0
        %1833 = vmatmul.mubr.f32.gmra.mxu0 %v1639
        %v1834 = vpop.f32.mrf.mxu0
        %v1835 = vadd.f32 0.0, %v1834
        %v1836 = vpop.f32.mrf.mxu0
        %1837 = vmatprep.mubr.f32.mxu0 0.0
        %1838 = vmatmul.mubr.f32.gmra.mxu0 %v1642
        %v1839 = vpop.f32.mrf.mxu0
        %v1840 = vadd.f32 0.0, %v1839
        %v1841 = vpop.f32.mrf.mxu0
        %1842 = vmatprep.mubr.f32.mxu0 0.0
        %1843 = vmatmul.mubr.f32.gmra.mxu0 %v1645
        %v1844 = vpop.f32.mrf.mxu0
        %v1845 = vadd.f32 0.0, %v1844
        %v1846 = vpop.f32.mrf.mxu0
        %1847 = vmatprep.mubr.f32.mxu0 0.0
        %1848 = vmatmul.mubr.f32.gmra.mxu0 %v1648
        %v1849 = vpop.f32.mrf.mxu0
        %v1850 = vadd.f32 0.0, %v1849
        %v1851 = vpop.f32.mrf.mxu0
        %1852 = vmatprep.mubr.f32.mxu0 0.0
        %1853 = vmatmul.mubr.f32.gmra.mxu0 %v1651
        %v1854 = vpop.f32.mrf.mxu0
        %v1855 = vadd.f32 0.0, %v1854
        %v1856 = vpop.f32.mrf.mxu0
        %1857 = vmatprep.mubr.f32.mxu0 0.0
        %1858 = vmatmul.mubr.f32.gmra.mxu0 %v1654
        %v1859 = vpop.f32.mrf.mxu0
        %v1860 = vadd.f32 0.0, %v1859
        %v1861 = vpop.f32.mrf.mxu0
        %1862 = vmatprep.mubr.f32.mxu0 0.0
        %1863 = vmatmul.mubr.f32.gmra.mxu0 %v1657
        %v1864 = vpop.f32.mrf.mxu0
        %v1865 = vadd.f32 0.0, %v1864
        %v1866 = vpop.f32.mrf.mxu0
        %1867 = vmatprep.mubr.f32.mxu0 0.0
        %1868 = vmatmul.mubr.f32.gmra.mxu0 %v1660
        %v1869 = vpop.f32.mrf.mxu0
        %v1870 = vadd.f32 0.0, %v1869
        %v1871 = vpop.f32.mrf.mxu0
        %1872 = vmatprep.mubr.f32.mxu0 0.0
        %1873 = vmatmul.mubr.f32.gmra.mxu0 %v1663
        %v1874 = vpop.f32.mrf.mxu0
        %v1875 = vadd.f32 0.0, %v1874
        %v1876 = vpop.f32.mrf.mxu0
        %1877 = vmatprep.mubr.f32.mxu0 0.0
        %1878 = vmatmul.mubr.f32.gmra.mxu0 %v1666
        %v1879 = vpop.f32.mrf.mxu0
        %v1880 = vadd.f32 0.0, %v1879
        %v1881 = vpop.f32.mrf.mxu0
        %1882 = vmatprep.mubr.f32.mxu0 0.0
        %1883 = vmatmul.mubr.f32.gmra.mxu0 %v1669
        %v1884 = vpop.f32.mrf.mxu0
        %v1885 = vadd.f32 0.0, %v1884
        %v1886 = vpop.f32.mrf.mxu0
        %1887 = vmatprep.mubr.f32.mxu0 0.0
        %1888 = vmatmul.mubr.f32.gmra.mxu0 %v1672
        %v1889 = vpop.f32.mrf.mxu0
        %v1890 = vadd.f32 0.0, %v1889
        %v1891 = vpop.f32.mrf.mxu0
        %1892 = vmatprep.mubr.f32.mxu0 0.0
        %1893 = vmatmul.mubr.f32.gmra.mxu0 %v1675
        %v1894 = vpop.f32.mrf.mxu0
        %v1895 = vadd.f32 0.0, %v1894
        %v1896 = vpop.f32.mrf.mxu0
        %1897 = vmatprep.mubr.f32.mxu0 0.0
        %1898 = vmatmul.mubr.f32.gmra.mxu0 %v1678
        %v1899 = vpop.f32.mrf.mxu0
        %v1900 = vadd.f32 0.0, %v1899
        %v1901 = vpop.f32.mrf.mxu0
        %1902 = vmatprep.mubr.f32.mxu0 0.0
        %1903 = vmatmul.mubr.f32.gmra.mxu0 %v1681
        %v1904 = vpop.f32.mrf.mxu0
        %v1905 = vadd.f32 0.0, %v1904
        %v1906 = vpop.f32.mrf.mxu0
        %1907 = vmatprep.mubr.f32.mxu0 0.0
        %1908 = vmatmul.mubr.f32.gmra.mxu0 %v1684
        %v1909 = vpop.f32.mrf.mxu0
        %v1910 = vadd.f32 0.0, %v1909
        %v1911 = vpop.f32.mrf.mxu0
        %1912 = vmatprep.mubr.f32.mxu0 0.0
        %1913 = vmatmul.mubr.f32.gmra.mxu0 %v1687
        %v1914 = vpop.f32.mrf.mxu0
        %v1915 = vadd.f32 0.0, %v1914
        %v1916 = vpop.f32.mrf.mxu0
        %1917 = vdwg.mxu0
        %vm1918 = vcmask 261120
        %v1919 = vsel %vm1918, %v1760, 0.0
        %v1920 = vsel %vm1918, %v1765, 0.0
        %v1921 = vadd.f32 %v1919, %v1920
        %v1922 = vsel %vm1918, %v1770, 0.0
        %v1923 = vadd.f32 %v1921, %v1922
        %v1924 = vsel %vm1918, %v1775, 0.0
        %v1925 = vadd.f32 %v1923, %v1924
        %v1926 = vsel %vm1918, %v1780, 0.0
        %v1927 = vadd.f32 %v1925, %v1926
        %v1928 = vsel %vm1918, %v1785, 0.0
        %v1929 = vadd.f32 %v1927, %v1928
        %v1930 = vsel %vm1918, %v1790, 0.0
        %v1931 = vadd.f32 %v1929, %v1930
        %v1932 = vsel %vm1918, %v1795, 0.0
        %v1933 = vadd.f32 %v1931, %v1932
        %v1934 = vsel %vm1918, %v1800, 0.0
        %v1935 = vadd.f32 %v1933, %v1934
        %v1936 = vsel %vm1918, %v1805, 0.0
        %v1937 = vadd.f32 %v1935, %v1936
        %v1938 = vsel %vm1918, %v1810, 0.0
        %v1939 = vadd.f32 %v1937, %v1938
        %v1940 = vsel %vm1918, %v1815, 0.0
        %v1941 = vadd.f32 %v1939, %v1940
        %v1942 = vsel %vm1918, %v1820, 0.0
        %v1943 = vadd.f32 %v1941, %v1942
        %v1944 = vsel %vm1918, %v1825, 0.0
        %v1945 = vadd.f32 %v1943, %v1944
        %v1946 = vsel %vm1918, %v1830, 0.0
        %v1947 = vadd.f32 %v1945, %v1946
        %v1948 = vsel %vm1918, %v1835, 0.0
        %v1949 = vadd.f32 %v1947, %v1948
        %v1950 = vsel %vm1918, %v1840, 0.0
        %v1951 = vadd.f32 %v1949, %v1950
        %v1952 = vsel %vm1918, %v1845, 0.0
        %v1953 = vadd.f32 %v1951, %v1952
        %v1954 = vsel %vm1918, %v1850, 0.0
        %v1955 = vadd.f32 %v1953, %v1954
        %v1956 = vsel %vm1918, %v1855, 0.0
        %v1957 = vadd.f32 %v1955, %v1956
        %v1958 = vsel %vm1918, %v1860, 0.0
        %v1959 = vadd.f32 %v1957, %v1958
        %v1960 = vsel %vm1918, %v1865, 0.0
        %v1961 = vadd.f32 %v1959, %v1960
        %v1962 = vsel %vm1918, %v1870, 0.0
        %v1963 = vadd.f32 %v1961, %v1962
        %v1964 = vsel %vm1918, %v1875, 0.0
        %v1965 = vadd.f32 %v1963, %v1964
        %v1966 = vsel %vm1918, %v1880, 0.0
        %v1967 = vadd.f32 %v1965, %v1966
        %v1968 = vsel %vm1918, %v1885, 0.0
        %v1969 = vadd.f32 %v1967, %v1968
        %v1970 = vsel %vm1918, %v1890, 0.0
        %v1971 = vadd.f32 %v1969, %v1970
        %v1972 = vsel %vm1918, %v1895, 0.0
        %v1973 = vadd.f32 %v1971, %v1972
        %v1974 = vsel %vm1918, %v1900, 0.0
        %v1975 = vadd.f32 %v1973, %v1974
        %v1976 = vsel %vm1918, %v1905, 0.0
        %v1977 = vadd.f32 %v1975, %v1976
        %v1978 = vsel %vm1918, %v1910, 0.0
        %v1979 = vadd.f32 %v1977, %v1978
        %v1980 = vsel %vm1918, %v1915, 0.0
        %v1981 = vadd.f32 %v1979, %v1980
        %v1982 = vrot.slane %v1981, 4
        %v1983 = vadd.f32 %v1981, %v1982
        %v1984 = vrot.slane %v1983, 2
        %v1985 = vadd.f32 %v1983, %v1984
        %v1986 = vrot.slane %v1985, 1
        %v1987 = vadd.f32 %v1985, %v1986
        %vm1988 = vcmask 253952
        %1989 = vst.msk [vmem:[%s190] sm:$0x1] %vm1988, %v1987
        %v1990 = vmul.f32 %v1760, %v1760
        %v1991 = vmul.f32 %v1765, %v1765
        %v1992 = vmul.f32 %v1770, %v1770
        %v1993 = vmul.f32 %v1775, %v1775
        %v1994 = vmul.f32 %v1780, %v1780
        %v1995 = vmul.f32 %v1785, %v1785
        %v1996 = vmul.f32 %v1790, %v1790
        %v1997 = vmul.f32 %v1795, %v1795
        %v1998 = vmul.f32 %v1800, %v1800
        %v1999 = vmul.f32 %v1805, %v1805
        %v2000 = vmul.f32 %v1810, %v1810
        %v2001 = vmul.f32 %v1815, %v1815
        %v2002 = vmul.f32 %v1820, %v1820
        %v2003 = vmul.f32 %v1825, %v1825
        %v2004 = vmul.f32 %v1830, %v1830
        %v2005 = vmul.f32 %v1835, %v1835
        %v2006 = vmul.f32 %v1840, %v1840
        %v2007 = vmul.f32 %v1845, %v1845
        %v2008 = vmul.f32 %v1850, %v1850
        %v2009 = vmul.f32 %v1855, %v1855
        %v2010 = vmul.f32 %v1860, %v1860
        %v2011 = vmul.f32 %v1865, %v1865
        %v2012 = vmul.f32 %v1870, %v1870
        %v2013 = vmul.f32 %v1875, %v1875
        %v2014 = vmul.f32 %v1880, %v1880
        %v2015 = vmul.f32 %v1885, %v1885
        %v2016 = vmul.f32 %v1890, %v1890
        %v2017 = vmul.f32 %v1895, %v1895
        %v2018 = vmul.f32 %v1900, %v1900
        %v2019 = vmul.f32 %v1905, %v1905
        %v2020 = vmul.f32 %v1910, %v1910
        %v2021 = vmul.f32 %v1915, %v1915
        %v2022 = vsel %vm1918, %v1990, 0.0
        %v2023 = vsel %vm1918, %v1991, 0.0
        %v2024 = vadd.f32 %v2022, %v2023
        %v2025 = vsel %vm1918, %v1992, 0.0
        %v2026 = vadd.f32 %v2024, %v2025
        %v2027 = vsel %vm1918, %v1993, 0.0
        %v2028 = vadd.f32 %v2026, %v2027
        %v2029 = vsel %vm1918, %v1994, 0.0
        %v2030 = vadd.f32 %v2028, %v2029
        %v2031 = vsel %vm1918, %v1995, 0.0
        %v2032 = vadd.f32 %v2030, %v2031
        %v2033 = vsel %vm1918, %v1996, 0.0
        %v2034 = vadd.f32 %v2032, %v2033
        %v2035 = vsel %vm1918, %v1997, 0.0
        %v2036 = vadd.f32 %v2034, %v2035
        %v2037 = vsel %vm1918, %v1998, 0.0
        %v2038 = vadd.f32 %v2036, %v2037
        %v2039 = vsel %vm1918, %v1999, 0.0
        %v2040 = vadd.f32 %v2038, %v2039
        %v2041 = vsel %vm1918, %v2000, 0.0
        %v2042 = vadd.f32 %v2040, %v2041
        %v2043 = vsel %vm1918, %v2001, 0.0
        %v2044 = vadd.f32 %v2042, %v2043
        %v2045 = vsel %vm1918, %v2002, 0.0
        %v2046 = vadd.f32 %v2044, %v2045
        %v2047 = vsel %vm1918, %v2003, 0.0
        %v2048 = vadd.f32 %v2046, %v2047
        %v2049 = vsel %vm1918, %v2004, 0.0
        %v2050 = vadd.f32 %v2048, %v2049
        %v2051 = vsel %vm1918, %v2005, 0.0
        %v2052 = vadd.f32 %v2050, %v2051
        %v2053 = vsel %vm1918, %v2006, 0.0
        %v2054 = vadd.f32 %v2052, %v2053
        %v2055 = vsel %vm1918, %v2007, 0.0
        %v2056 = vadd.f32 %v2054, %v2055
        %v2057 = vsel %vm1918, %v2008, 0.0
        %v2058 = vadd.f32 %v2056, %v2057
        %v2059 = vsel %vm1918, %v2009, 0.0
        %v2060 = vadd.f32 %v2058, %v2059
        %v2061 = vsel %vm1918, %v2010, 0.0
        %v2062 = vadd.f32 %v2060, %v2061
        %v2063 = vsel %vm1918, %v2011, 0.0
        %v2064 = vadd.f32 %v2062, %v2063
        %v2065 = vsel %vm1918, %v2012, 0.0
        %v2066 = vadd.f32 %v2064, %v2065
        %v2067 = vsel %vm1918, %v2013, 0.0
        %v2068 = vadd.f32 %v2066, %v2067
        %v2069 = vsel %vm1918, %v2014, 0.0
        %v2070 = vadd.f32 %v2068, %v2069
        %v2071 = vsel %vm1918, %v2015, 0.0
        %v2072 = vadd.f32 %v2070, %v2071
        %v2073 = vsel %vm1918, %v2016, 0.0
        %v2074 = vadd.f32 %v2072, %v2073
        %v2075 = vsel %vm1918, %v2017, 0.0
        %v2076 = vadd.f32 %v2074, %v2075
        %v2077 = vsel %vm1918, %v2018, 0.0
        %v2078 = vadd.f32 %v2076, %v2077
        %v2079 = vsel %vm1918, %v2019, 0.0
        %v2080 = vadd.f32 %v2078, %v2079
        %v2081 = vsel %vm1918, %v2020, 0.0
        %v2082 = vadd.f32 %v2080, %v2081
        %v2083 = vsel %vm1918, %v2021, 0.0
        %v2084 = vadd.f32 %v2082, %v2083
        %v2085 = vrot.slane %v2084, 4
        %v2086 = vadd.f32 %v2084, %v2085
        %v2087 = vrot.slane %v2086, 2
        %v2088 = vadd.f32 %v2086, %v2087
        %v2089 = vrot.slane %v2088, 1
        %v2090 = vadd.f32 %v2088, %v2089
        %2091 = vst.msk [vmem:[%s190 + $0x1] sm:$0x1] %vm1988, %v2090
        %2092 = vst.msk [vmem:[%s183] sm:$0xff] %vm1918, %v1760
        %2093 = vst.msk [vmem:[%s183 + $0x8] sm:$0xff] %vm1918, %v1765
        %2094 = vst.msk [vmem:[%s183 + $0x10] sm:$0xff] %vm1918, %v1770
        %2095 = vst.msk [vmem:[%s183 + $0x18] sm:$0xff] %vm1918, %v1775
        %2096 = vst.msk [vmem:[%s183 + $0x20] sm:$0xff] %vm1918, %v1780
        %2097 = vst.msk [vmem:[%s183 + $0x28] sm:$0xff] %vm1918, %v1785
        %2098 = vst.msk [vmem:[%s183 + $0x30] sm:$0xff] %vm1918, %v1790
        %2099 = vst.msk [vmem:[%s183 + $0x38] sm:$0xff] %vm1918, %v1795
        %2100 = vst.msk [vmem:[%s183 + $0x40] sm:$0xff] %vm1918, %v1800
        %2101 = vst.msk [vmem:[%s183 + $0x48] sm:$0xff] %vm1918, %v1805
        %2102 = vst.msk [vmem:[%s183 + $0x50] sm:$0xff] %vm1918, %v1810
        %2103 = vst.msk [vmem:[%s183 + $0x58] sm:$0xff] %vm1918, %v1815
        %2104 = vst.msk [vmem:[%s183 + $0x60] sm:$0xff] %vm1918, %v1820
        %2105 = vst.msk [vmem:[%s183 + $0x68] sm:$0xff] %vm1918, %v1825
        %2106 = vst.msk [vmem:[%s183 + $0x70] sm:$0xff] %vm1918, %v1830
        %2107 = vst.msk [vmem:[%s183 + $0x78] sm:$0xff] %vm1918, %v1835
        %2108 = vst.msk [vmem:[%s183 + $0x80] sm:$0xff] %vm1918, %v1840
        %2109 = vst.msk [vmem:[%s183 + $0x88] sm:$0xff] %vm1918, %v1845
        %2110 = vst.msk [vmem:[%s183 + $0x90] sm:$0xff] %vm1918, %v1850
        %2111 = vst.msk [vmem:[%s183 + $0x98] sm:$0xff] %vm1918, %v1855
        %2112 = vst.msk [vmem:[%s183 + $0xa0] sm:$0xff] %vm1918, %v1860
        %2113 = vst.msk [vmem:[%s183 + $0xa8] sm:$0xff] %vm1918, %v1865
        %2114 = vst.msk [vmem:[%s183 + $0xb0] sm:$0xff] %vm1918, %v1870
        %2115 = vst.msk [vmem:[%s183 + $0xb8] sm:$0xff] %vm1918, %v1875
        %2116 = vst.msk [vmem:[%s183 + $0xc0] sm:$0xff] %vm1918, %v1880
        %2117 = vst.msk [vmem:[%s183 + $0xc8] sm:$0xff] %vm1918, %v1885
        %2118 = vst.msk [vmem:[%s183 + $0xd0] sm:$0xff] %vm1918, %v1890
        %2119 = vst.msk [vmem:[%s183 + $0xd8] sm:$0xff] %vm1918, %v1895
        %2120 = vst.msk [vmem:[%s183 + $0xe0] sm:$0xff] %vm1918, %v1900
        %2121 = vst.msk [vmem:[%s183 + $0xe8] sm:$0xff] %vm1918, %v1905
        %2122 = vst.msk [vmem:[%s183 + $0xf0] sm:$0xff] %vm1918, %v1910
        %2123 = vst.msk [vmem:[%s183 + $0xf8] sm:$0xff] %vm1918, %v1915
        %s2124 = sand.u32 %s90, 1
        %s2125 = scalar_lea.sflag [#allocation4], %s2124
        %s2126 = sand.u32 %s90, 1
        %s2127 = smul.addr %s2126, 256
        %s2128 = scalar_lea.vmem [#allocation3], %s2127
        %s2129 = sand.u32 %s118, 1
        %s2130 = scalar_lea.sflag [#allocation6], %s2129
        %s2131 = sand.u32 %s118, 1
        %s2132 = smul.addr %s2131, 2
        %s2133 = scalar_lea.vmem [#allocation5], %s2132
        // Predicated region
        $region29: #{tpu_custom_call.1} parent=27 // pred_check
          %p2134 = pneg %p100
        $region30: #{tpu_custom_call.1} parent=27 // pred_check_branch
          %2136 = sbr.rel (%p2134) target = $region32
        $region31: #{tpu_custom_call.1} parent=27 // pred_region
          %s2137 = smul.u32 16, %s26
          %s2139 = ssub.s32 4096, 4096
          %2140 = vsyncadd %s2125, %s2139
          %s2141 = smul.addr %s2137, 2
          %s2142 = smul.addr %s25, 32
          %s2143 = sadd.s32 %s2141, %s2142
          %s2144 = smul.addr %s2143, 128
          %s2145 = scalar_lea.hbm %s2, %s2144
          %s2146 = sshll.u32 %s2128, 4
          %s2147 = int_to_ptr.vmem [resolvable:$true] %s2146
          %2152 = dma.vmem_to_hbm [thread:$0]  %s2147, 4096, %s2145, %s2125, 128, 128, 8
        $region32: #{tpu_custom_call.1} parent=27 // pred_fallthru
          _
        // Predicated region
        $region33: #{tpu_custom_call.1} parent=27 // pred_check
          %p2153 = pneg %p128
        $region34: #{tpu_custom_call.1} parent=27 // pred_check_branch
          %2155 = sbr.rel (%p2153) target = $region36
        $region35: #{tpu_custom_call.1} parent=27 // pred_region
          %s2157 = ssub.s32 32, 32
          %2158 = vsyncadd %s2130, %s2157
          %s2159 = sadd.s32 %s26, %s25
          %s2160 = smul.addr %s2159, 32
          %s2161 = scalar_lea.hbm %s3, %s2160
          %s2163 = sshll.u32 %s2133, 4
          %s2164 = int_to_ptr.vmem [resolvable:$true] %s2163
          %2166 = dma.vmem_to_hbm [thread:$0]  %s2164, 32, %s2161, %s2130
        $region36: #{tpu_custom_call.1} parent=27 // pred_fallthru
          _
      $region28: #{tpu_custom_call.1} parent=5 // pred_fallthru
        _
      %p2167 = scmp.le.s32.totalorder 2, %s16
      // Predicated region
      $region37: #{tpu_custom_call.1} parent=5 // pred_check
        %p2168 = pneg %p2167
      $region38: #{tpu_custom_call.1} parent=5 // pred_check_branch
        %2170 = sbr.rel (%p2168) target = $region40
      $region39: #{tpu_custom_call.1} parent=5 // pred_region
        %s2171 = ssub.s32 %s16, 2
        // Predicated region
        $region41: #{tpu_custom_call.1} parent=39 // pred_check
          %p2172 = pneg %p106
        $region42: #{tpu_custom_call.1} parent=39 // pred_check_branch
          %2174 = sbr.rel (%p2172) target = $region44
        $region43: #{tpu_custom_call.1} parent=39 // pred_region
          %s2175 = sand.u32 %s91, 1
          %s2176 = scalar_lea.sflag [#allocation4], %s2175
          %s2177 = sand.u32 %s91, 1
          %s2178 = smul.addr %s2177, 256
          %s2179 = scalar_lea.vmem [#allocation3], %s2178
          %2180 = dma.done %s2176, 4096
        $region44: #{tpu_custom_call.1} parent=39 // pred_fallthru
          _
        // Predicated region
        $region45: #{tpu_custom_call.1} parent=39 // pred_check
          %p2181 = pneg %p134
        $region46: #{tpu_custom_call.1} parent=39 // pred_check_branch
          %2183 = sbr.rel (%p2181) target = $region48
        $region47: #{tpu_custom_call.1} parent=39 // pred_region
          %s2184 = sand.u32 %s119, 1
          %s2185 = scalar_lea.sflag [#allocation6], %s2184
          %s2186 = sand.u32 %s119, 1
          %s2187 = smul.addr %s2186, 2
          %s2188 = scalar_lea.vmem [#allocation5], %s2187
          %2189 = dma.done %s2185, 32
        $region48: #{tpu_custom_call.1} parent=39 // pred_fallthru
          _
      $region40: #{tpu_custom_call.1} parent=5 // pred_fallthru
        _
    $region6: #{tpu_custom_call.1} parent=1 // loop_footer
      %s20 = sadd.s32 1, %s16
    $region7: #{tpu_custom_call.1} parent=1 // loop_footer_branch
      %15 = sbr.rel target = $region3
    $region8: #{tpu_custom_call.1} parent=1 // loop_exit
      _
    %2190 = vsyncpa [#allocation4], 1
    %s2191 = scalar_lea.sflag [#allocation4], 1
    %2192 = vsyncpa %s2191, 1
    %2193 = vsyncpa [#allocation6], 1
    %s2194 = scalar_lea.sflag [#allocation6], 1
    %2195 = vsyncpa %s2194, 1

</llo_original>
